<compile_context>
chip_gen: v6e
topology: v6e:2x2x1
jax: 0.10.0
libtpu: 0.0.40
codegen_flags: <defaults>
</compile_context>

<pallas_src>
import functools
import math

import jax
import jax.numpy as jnp
from jax.experimental import pallas as pl
from jax.experimental.pallas import tpu as pltpu


# ----------------------------------------------------------------------------
# Pallas kernels
# ----------------------------------------------------------------------------
def _conv1_lrelu_kernel(z_ref, w_ref, b_ref, o_ref, *, m_half, wo_half, slope):
    """Implicit-GEMM conv1 + bias + LeakyReLU for one sample.

    z_ref: (1, m_half + wo_half, 2*K1)  packed space-to-depth rows (2 positions/row)
    w_ref: (2, 2*K1, 128)               block-diagonal row-tap weights
    b_ref: (1, 128)                     packed bias (f32)
    o_ref: (1, m_half, 128)             two 64-ch spatial positions per lane row
    """
    z = z_ref[0]                                   # (m_half + wo_half, 2*K1)
    a0 = z[0:m_half, :]
    a1 = z[wo_half:wo_half + m_half, :]
    acc = jnp.dot(a0, w_ref[0], preferred_element_type=jnp.float32)
    acc = acc + jnp.dot(a1, w_ref[1], preferred_element_type=jnp.float32)
    acc = acc + b_ref[...]                          # (1,128) broadcast, f32
    o_ref[0] = jnp.where(acc >= 0, acc, slope * acc).astype(o_ref.dtype)


def _conv2_in_lrelu_kernel(z_ref, w_ref, g_ref, b_ref, o_ref, *, m, wo, eps, slope):
    """Fused implicit-GEMM conv2 + InstanceNorm2d(affine) + LeakyReLU, one sample.

    z_ref: (1, m + wo, K2)   space-to-depth rows of conv1's output
    w_ref: (2, K2, 128)      row-tap weights (conv2 bias dropped: cancelled by IN)
    g_ref/b_ref: (1, 128)    gamma / beta (f32)
    o_ref: (1, m, 128)       normalized + activated output (f32)
    """
    z = z_ref[0]                                   # (m + wo, K2)
    a0 = z[0:m, :]
    a1 = z[wo:wo + m, :]
    acc = jnp.dot(a0, w_ref[0], preferred_element_type=jnp.float32)
    acc = acc + jnp.dot(a1, w_ref[1], preferred_element_type=jnp.float32)
    # InstanceNorm2d: per-sample, per-channel stats over the spatial axis (biased var).
    mean = jnp.mean(acc, axis=0, keepdims=True)     # (1, 128)
    cen = acc - mean
    var = jnp.mean(cen * cen, axis=0, keepdims=True)
    y = cen * jax.lax.rsqrt(var + eps)
    y = y * g_ref[...] + b_ref[...]
    o_ref[0] = jnp.where(y >= 0, y, slope * y).astype(o_ref.dtype)


# ----------------------------------------------------------------------------
# Layout plumbing (cheap, O(activation) XLA ops — no 16x expansion)
# ----------------------------------------------------------------------------
def _conv_input_prep(x_nhwc):
    """pad(1) + space-to-depth(2x2) + width-pair concat + flatten.

    Turns k4/s2/p1 conv into a 2-row-tap implicit GEMM:
        out_flat[r, :] = sum_a zflat[r + a*Wo, :] @ w_tap[a]
    where r = ho*Wo + wo and zflat has Ho*Wo + Wo rows of width 8*Cin.
    """
    N, H, W, C = x_nhwc.shape
    assert H % 2 == 0 and W % 2 == 0, "k4/s2/p1 path expects even H, W"
    xp = jnp.pad(x_nhwc, ((0, 0), (1, 1), (1, 1), (0, 0)))
    Hz, Wz = (H + 2) // 2, (W + 2) // 2
    z = xp.reshape(N, Hz, 2, Wz, 2, C).transpose(0, 1, 3, 2, 4, 5)
    z = z.reshape(N, Hz, Wz, 4 * C)                               # (di,dj,c) channels
    zcat = jnp.concatenate([z[:, :, :-1, :], z[:, :, 1:, :]], axis=-1)  # (N,Hz,Wo,8C)
    Ho, Wo = H // 2, W // 2
    return zcat.reshape(N, Hz * Wo, 8 * C), Ho, Wo


def _make_tap_weights(w):
    """OIHW conv weight (Cout, Cin, 4, 4) -> 2 row-tap GEMM weights (2, 8*Cin, Cout).

    K layout per tap a: (b, di, dj, ci) — matches _conv_input_prep's channel order.
    """
    cout, cin = w.shape[0], w.shape[1]
    wt = jnp.transpose(w, (2, 3, 1, 0)).reshape(2, 2, 2, 2, cin, cout)  # (a,di,b,dj,ci,co)
    wt = jnp.transpose(wt, (0, 2, 1, 3, 4, 5))                          # (a,b,di,dj,ci,co)
    return wt.reshape(2, 8 * cin, cout)


# ----------------------------------------------------------------------------
# Pallas wrappers
# ----------------------------------------------------------------------------
_VMEM_LIMIT = 32 * 1024 * 1024  # safe on v5e/v6e/v7x


def _conv1(zflat, wcat, bias, Ho, Wo, *, compute_dtype, slope=0.2):
    """Conv1 (implicit GEMM) + bias + LeakyReLU; lane-dense packed output."""
    N, rows, K = zflat.shape                 # rows = Ho*Wo + Wo, K = 8*Cin
    Cout = wcat.shape[-1]                    # 64
    assert rows % 2 == 0 and Wo % 2 == 0
    m_half, wo_half = (Ho * Wo) // 2, Wo // 2
    rows_p, Kp = rows // 2, 2 * K

    # Block-diagonal weights: two spatial positions share one 128-lane output row.
    wp = jnp.zeros((2, Kp, 2 * Cout), jnp.float32)
    wp = wp.at[:, :K, :Cout].set(wcat).at[:, K:, Cout:].set(wcat)
    bp = jnp.concatenate([bias, bias])[None, :]                    # (1, 128) f32

    zp = zflat.reshape(N, rows_p, Kp).astype(compute_dtype)
    wp = wp.astype(compute_dtype)

    kernel = functools.partial(_conv1_lrelu_kernel, m_half=m_half,
                               wo_half=wo_half, slope=slope)
    out = pl.pallas_call(
        kernel,
        out_shape=jax.ShapeDtypeStruct((N, m_half, 2 * Cout), compute_dtype),
        grid=(N,),
        in_specs=[
            pl.BlockSpec((1, rows_p, Kp), lambda n: (n, 0, 0)),
            pl.BlockSpec((2, Kp, 2 * Cout), lambda n: (0, 0, 0)),
            pl.BlockSpec((1, 2 * Cout), lambda n: (0, 0)),
        ],
        out_specs=pl.BlockSpec((1, m_half, 2 * Cout), lambda n: (n, 0, 0)),
        compiler_params=pltpu.CompilerParams(
            dimension_semantics=("parallel",), vmem_limit_bytes=_VMEM_LIMIT),
    )(zp, wp, bp)
    # (N, M/2, 128) row-major is bit-identical to NHWC (N, Ho, Wo, 64): free reshape.
    return out.reshape(N, Ho, Wo, Cout)


def _conv2_in_lrelu(zflat, wcat, gamma, beta, Ho, Wo, *, compute_dtype,
                    eps=1e-3, slope=0.2):
    """Fused conv2 (implicit GEMM, no bias) + InstanceNorm2d(affine) + LeakyReLU."""
    N, rows, K = zflat.shape                 # rows = Ho*Wo + Wo, K = 512
    Cout = wcat.shape[-1]                    # 128
    M = Ho * Wo

    z = zflat.astype(compute_dtype)
    w = wcat.astype(compute_dtype)
    g = gamma[None, :].astype(jnp.float32)
    b = beta[None, :].astype(jnp.float32)

    kernel = functools.partial(_conv2_in_lrelu_kernel, m=M, wo=Wo, eps=eps, slope=slope)
    out = pl.pallas_call(
        kernel,
        out_shape=jax.ShapeDtypeStruct((N, M, Cout), jnp.float32),
        grid=(N,),
        in_specs=[
            pl.BlockSpec((1, rows, K), lambda n: (n, 0, 0)),
            pl.BlockSpec((2, K, Cout), lambda n: (0, 0, 0)),
            pl.BlockSpec((1, Cout), lambda n: (0, 0)),
            pl.BlockSpec((1, Cout), lambda n: (0, 0)),
        ],
        out_specs=pl.BlockSpec((1, M, Cout), lambda n: (n, 0, 0)),
        compiler_params=pltpu.CompilerParams(
            dimension_semantics=("parallel",), vmem_limit_bytes=_VMEM_LIMIT),
    )(z, w, g, b)
    return out.reshape(N, Ho, Wo, Cout)


def adversarial_network_forward(x, params, *, compute_dtype=jnp.bfloat16):
    """x: (N, Cin, H, W) f32 NCHW (PyTorch layout). Returns (N, 128, H//4, W//4) f32."""
    w1, b1, w2 = params["w1"], params["b1"], params["w2"]
    gamma, beta = params["gamma"], params["beta"]
    # NOTE: params["b2"] (conv2 bias) is intentionally unused — a per-channel
    # constant added before InstanceNorm2d is exactly cancelled by the per-channel
    # mean subtraction, so dropping it is a mathematical no-op.
    N, Cin, H, W = x.shape
    assert H % 4 == 0 and W % 4 == 0, "demo path expects H, W multiples of 4"

    x_nhwc = jnp.transpose(x, (0, 2, 3, 1))        # single boundary transpose in

    # --- Conv1 (Cin -> 64, k4 s2 p1) + LeakyReLU(0.2) -------------------------
    z1, Ho1, Wo1 = _conv_input_prep(x_nhwc)
    y1 = _conv1(z1, _make_tap_weights(w1), b1, Ho1, Wo1, compute_dtype=compute_dtype)

    # --- Conv2 (64 -> 128) + InstanceNorm2d(128, affine, eps=1e-3) + LReLU, fused
    z2, Ho2, Wo2 = _conv_input_prep(y1)
    y2 = _conv2_in_lrelu(z2, _make_tap_weights(w2), gamma, beta, Ho2, Wo2,
                         compute_dtype=compute_dtype, eps=1e-3)

    return jnp.transpose(y2, (0, 3, 1, 2))         # single boundary transpose out


# ----------------------------------------------------------------------------
# Pure-JAX reference (keeps the conv2 bias, so it also validates the dropped bias)
# ----------------------------------------------------------------------------
def reference_forward(x, params, eps=1e-3, slope=0.2):
    w1, b1, w2, b2 = params["w1"], params["b1"], params["w2"], params["b2"]
    gamma, beta = params["gamma"], params["beta"]
    dn = ("NCHW", "OIHW", "NCHW")
    y = jax.lax.conv_general_dilated(x, w1, (2, 2), ((1, 1), (1, 1)),
                                     dimension_numbers=dn) + b1[None, :, None, None]
    y = jnp.where(y >= 0, y, slope * y)
    y = jax.lax.conv_general_dilated(y, w2, (2, 2), ((1, 1), (1, 1)),
                                     dimension_numbers=dn) + b2[None, :, None, None]
    mean = jnp.mean(y, axis=(2, 3), keepdims=True)
    var = jnp.mean((y - mean) ** 2, axis=(2, 3), keepdims=True)
    y = (y - mean) / jnp.sqrt(var + eps)
    y = y * gamma[None, :, None, None] + beta[None, :, None, None]
    return jnp.where(y >= 0, y, slope * y)


# ----------------------------------------------------------------------------
# Deterministic parameter init (shapes per the PyTorch module __init__)
# ----------------------------------------------------------------------------
def init_params(key, in_feature):
    k = 4
    keys = jax.random.split(key, 6)

    def conv_init(kw, kb, cout, cin):
        fan_in = cin * k * k
        bound = 1.0 / math.sqrt(fan_in)
        w = jax.random.uniform(kw, (cout, cin, k, k), jnp.float32, -bound, bound)
        b = jax.random.uniform(kb, (cout,), jnp.float32, -bound, bound)
        return w, b

    w1, b1 = conv_init(keys[0], keys[1], 64, in_feature)
    w2, b2 = conv_init(keys[2], keys[3], 128, 64)
    # InstanceNorm2d affine params (PyTorch default is ones/zeros; perturb so the
    # affine path is actually exercised).
    gamma = 1.0 + 0.1 * jax.random.normal(keys[4], (128,), jnp.float32)
    beta = 0.1 * jax.random.normal(keys[5], (128,), jnp.float32)
    return dict(w1=w1, b1=b1, w2=w2, b2=b2, gamma=gamma, beta=beta)


if __name__ == "__main__":
    key = jax.random.PRNGKey(0)
    k_x, k_p = jax.random.split(key)

    N, Cin, H, W = 2, 4, 16, 16
    x = jax.random.normal(k_x, (N, Cin, H, W), jnp.float32)
    params = init_params(k_p, Cin)

    ref = jax.block_until_ready(reference_forward(x, params))

    # f32 matmul-input path: tight correctness gate.
    fwd_f32 = jax.jit(functools.partial(adversarial_network_forward,
                                        compute_dtype=jnp.float32))
    out_f32 = jax.block_until_ready(fwd_f32(x, params))
    assert out_f32.shape == (N, 128, H // 4, W // 4), out_f32.shape
    err_f32 = float(jnp.max(jnp.abs(out_f32 - ref)))
    if err_f32 > 1e-3:
        raise AssertionError(f"f32 Pallas output mismatch vs reference: max|diff|={err_f32}")

    # bf16 matmul-input path (default): looser gate — the error is bf16 *input*
    # rounding only (MXU accumulation, bias, norm and activation stay f32).
    fwd_bf16 = jax.jit(functools.partial(adversarial_network_forward,
                                         compute_dtype=jnp.bfloat16))
    out_bf16 = jax.block_until_ready(fwd_bf16(x, params))
    err_bf16 = float(jnp.max(jnp.abs(out_bf16 - ref)))
    if err_bf16 > 1.5e-1:
        raise AssertionError(f"bf16 Pallas output mismatch vs reference: max|diff|={err_bf16}")

    print("KERNEL_OK")
</pallas_src>

<mosaic_0001>
module attributes {stable_mosaic.version = 11 : i64} {
  func.func @_conv1_lrelu_kernel(%arg0: i32, %arg1: memref<1x36x64xf32, #tpu.memory_space<vmem>>, %arg2: memref<2x64x128xf32, #tpu.memory_space<vmem>>, %arg3: memref<1x128xf32, #tpu.memory_space<vmem>>, %arg4: memref<1x32x128xf32, #tpu.memory_space<vmem>>) attributes {dimension_semantics = [#tpu.dimension_semantics<parallel>], iteration_bounds = array<i64: 2>, scalar_prefetch = 0 : i64, scratch_operands = 0 : i64, tpu.core_type = #tpu.core_type<tc>, window_params = [{transform_indices = @transform_0, window_bounds = array<i64: 1, 36, 64>}, {pipeline_mode = #tpu.pipeline_mode<synchronous>, transform_indices = @transform_1, window_bounds = array<i64: 2, 64, 128>}, {pipeline_mode = #tpu.pipeline_mode<synchronous>, transform_indices = @transform_2, window_bounds = array<i64: 1, 128>}, {transform_indices = @transform_3, window_bounds = array<i64: 1, 32, 128>}]} {
    %c0 = arith.constant 0 : index
    %c0_0 = arith.constant 0 : index
    %c0_1 = arith.constant 0 : index
    %0 = vector.load %arg1[%c0, %c0_0, %c0_1] : memref<1x36x64xf32, #tpu.memory_space<vmem>>, vector<1x36x64xf32>
    %1 = vector.shape_cast %0 : vector<1x36x64xf32> to vector<36x64xf32>
    %2 = vector.extract_strided_slice %1 {offsets = [0, 0], sizes = [32, 64], strides = [1, 1]} : vector<36x64xf32> to vector<32x64xf32>
    %3 = vector.extract_strided_slice %1 {offsets = [4, 0], sizes = [32, 64], strides = [1, 1]} : vector<36x64xf32> to vector<32x64xf32>
    %c0_2 = arith.constant 0 : index
    %c0_3 = arith.constant 0 : index
    %c0_4 = arith.constant 0 : index
    %4 = vector.load %arg2[%c0_2, %c0_3, %c0_4] : memref<2x64x128xf32, #tpu.memory_space<vmem>>, vector<1x64x128xf32>
    %5 = vector.shape_cast %4 : vector<1x64x128xf32> to vector<64x128xf32>
    %cst = arith.constant dense<0.000000e+00> : vector<32x128xf32>
    %6 = tpu.matmul %2, %5, %cst {dimension_numbers = #tpu.dot_dimension_numbers<[1], [0], [0], [1], [0, 0, 1, 1], [], []>} : vector<32x64xf32>, vector<64x128xf32>, vector<32x128xf32> -> vector<32x128xf32>
    %c1 = arith.constant 1 : index
    %c0_5 = arith.constant 0 : index
    %c0_6 = arith.constant 0 : index
    %7 = vector.load %arg2[%c1, %c0_5, %c0_6] : memref<2x64x128xf32, #tpu.memory_space<vmem>>, vector<1x64x128xf32>
    %8 = vector.shape_cast %7 : vector<1x64x128xf32> to vector<64x128xf32>
    %cst_7 = arith.constant dense<0.000000e+00> : vector<32x128xf32>
    %9 = tpu.matmul %3, %8, %cst_7 {dimension_numbers = #tpu.dot_dimension_numbers<[1], [0], [0], [1], [0, 0, 1, 1], [], []>} : vector<32x64xf32>, vector<64x128xf32>, vector<32x128xf32> -> vector<32x128xf32>
    %10 = arith.addf %6, %9 : vector<32x128xf32>
    %c0_8 = arith.constant 0 : index
    %c0_9 = arith.constant 0 : index
    %11 = vector.load %arg3[%c0_8, %c0_9] : memref<1x128xf32, #tpu.memory_space<vmem>>, vector<1x128xf32>
    %12 = vector.broadcast %11 : vector<1x128xf32> to vector<32x128xf32>
    %13 = arith.addf %10, %12 : vector<32x128xf32>
    %cst_10 = arith.constant 0.000000e+00 : f32
    %14 = vector.broadcast %cst_10 : f32 to vector<32x128xf32>
    %15 = arith.cmpf oge, %13, %14 : vector<32x128xf32>
    %cst_11 = arith.constant 2.000000e-01 : f32
    %16 = vector.broadcast %cst_11 : f32 to vector<32x128xf32>
    %17 = arith.mulf %16, %13 : vector<32x128xf32>
    %18 = arith.select %15, %13, %17 : vector<32x128xi1>, vector<32x128xf32>
    %c0_12 = arith.constant 0 : index
    %c0_13 = arith.constant 0 : index
    %c0_14 = arith.constant 0 : index
    %19 = vector.load %arg4[%c0_12, %c0_13, %c0_14] : memref<1x32x128xf32, #tpu.memory_space<vmem>>, vector<1x32x128xf32>
    %20 = vector.shape_cast %19 : vector<1x32x128xf32> to vector<32x128xf32>
    %21 = vector.shape_cast %18 : vector<32x128xf32> to vector<1x32x128xf32>
    tpu.vector_store %arg4[%c0_12, %c0_13, %c0_14], %21 {strides = array<i32>} : memref<1x32x128xf32, #tpu.memory_space<vmem>>, vector<1x32x128xf32>,
    return
  }
  func.func @transform_0(%arg0: i32) -> (i32, i32, i32) {
    %c0_i32 = arith.constant 0 : i32
    %c0_i32_0 = arith.constant 0 : i32
    %c0_i32_1 = arith.constant 0 : i32
    return %arg0, %c0_i32, %c0_i32_0 : i32, i32, i32
  }
  func.func @transform_1(%arg0: i32) -> (i32, i32, i32) {
    %c0_i32 = arith.constant 0 : i32
    %c0_i32_0 = arith.constant 0 : i32
    %c0_i32_1 = arith.constant 0 : i32
    %c0_i32_2 = arith.constant 0 : i32
    return %c0_i32, %c0_i32_0, %c0_i32_1 : i32, i32, i32
  }
  func.func @transform_2(%arg0: i32) -> (i32, i32) {
    %c0_i32 = arith.constant 0 : i32
    %c0_i32_0 = arith.constant 0 : i32
    %c0_i32_1 = arith.constant 0 : i32
    return %c0_i32, %c0_i32_0 : i32, i32
  }
  func.func @transform_3(%arg0: i32) -> (i32, i32, i32) {
    %c0_i32 = arith.constant 0 : i32
    %c0_i32_0 = arith.constant 0 : i32
    %c0_i32_1 = arith.constant 0 : i32
    return %arg0, %c0_i32, %c0_i32_0 : i32, i32, i32
  }
}

module attributes {stable_mosaic.version = 11 : i64} {
  func.func @_conv2_in_lrelu_kernel(%arg0: i32, %arg1: memref<1x20x512xf32, #tpu.memory_space<vmem>>, %arg2: memref<2x512x128xf32, #tpu.memory_space<vmem>>, %arg3: memref<1x128xf32, #tpu.memory_space<vmem>>, %arg4: memref<1x128xf32, #tpu.memory_space<vmem>>, %arg5: memref<1x16x128xf32, #tpu.memory_space<vmem>>) attributes {dimension_semantics = [#tpu.dimension_semantics<parallel>], iteration_bounds = array<i64: 2>, scalar_prefetch = 0 : i64, scratch_operands = 0 : i64, tpu.core_type = #tpu.core_type<tc>, window_params = [{transform_indices = @transform_0, window_bounds = array<i64: 1, 20, 512>}, {pipeline_mode = #tpu.pipeline_mode<synchronous>, transform_indices = @transform_1, window_bounds = array<i64: 2, 512, 128>}, {pipeline_mode = #tpu.pipeline_mode<synchronous>, transform_indices = @transform_2, window_bounds = array<i64: 1, 128>}, {pipeline_mode = #tpu.pipeline_mode<synchronous>, transform_indices = @transform_3, window_bounds = array<i64: 1, 128>}, {transform_indices = @transform_4, window_bounds = array<i64: 1, 16, 128>}]} {
    %c0 = arith.constant 0 : index
    %c0_0 = arith.constant 0 : index
    %c0_1 = arith.constant 0 : index
    %0 = vector.load %arg1[%c0, %c0_0, %c0_1] : memref<1x20x512xf32, #tpu.memory_space<vmem>>, vector<1x20x512xf32>
    %1 = vector.shape_cast %0 : vector<1x20x512xf32> to vector<20x512xf32>
    %2 = vector.extract_strided_slice %1 {offsets = [0, 0], sizes = [16, 512], strides = [1, 1]} : vector<20x512xf32> to vector<16x512xf32>
    %3 = vector.extract_strided_slice %1 {offsets = [4, 0], sizes = [16, 512], strides = [1, 1]} : vector<20x512xf32> to vector<16x512xf32>
    %c0_2 = arith.constant 0 : index
    %c0_3 = arith.constant 0 : index
    %c0_4 = arith.constant 0 : index
    %4 = vector.load %arg2[%c0_2, %c0_3, %c0_4] : memref<2x512x128xf32, #tpu.memory_space<vmem>>, vector<1x512x128xf32>
    %5 = vector.shape_cast %4 : vector<1x512x128xf32> to vector<512x128xf32>
    %cst = arith.constant dense<0.000000e+00> : vector<16x128xf32>
    %6 = tpu.matmul %2, %5, %cst {dimension_numbers = #tpu.dot_dimension_numbers<[1], [0], [0], [1], [0, 0, 1, 1], [], []>} : vector<16x512xf32>, vector<512x128xf32>, vector<16x128xf32> -> vector<16x128xf32>
    %c1 = arith.constant 1 : index
    %c0_5 = arith.constant 0 : index
    %c0_6 = arith.constant 0 : index
    %7 = vector.load %arg2[%c1, %c0_5, %c0_6] : memref<2x512x128xf32, #tpu.memory_space<vmem>>, vector<1x512x128xf32>
    %8 = vector.shape_cast %7 : vector<1x512x128xf32> to vector<512x128xf32>
    %cst_7 = arith.constant dense<0.000000e+00> : vector<16x128xf32>
    %9 = tpu.matmul %3, %8, %cst_7 {dimension_numbers = #tpu.dot_dimension_numbers<[1], [0], [0], [1], [0, 0, 1, 1], [], []>} : vector<16x512xf32>, vector<512x128xf32>, vector<16x128xf32> -> vector<16x128xf32>
    %10 = arith.addf %6, %9 : vector<16x128xf32>
    %cst_8 = arith.constant dense<0.000000e+00> : vector<128xf32>
    %11 = vector.multi_reduction <add>, %10, %cst_8 [0] : vector<16x128xf32> to vector<128xf32>
    %12 = vector.shape_cast %11 : vector<128xf32> to vector<1x128xf32>
    %cst_9 = arith.constant 1.600000e+01 : f32
    %13 = vector.broadcast %cst_9 : f32 to vector<1x128xf32>
    %14 = arith.divf %12, %13 : vector<1x128xf32>
    %15 = vector.broadcast %14 : vector<1x128xf32> to vector<16x128xf32>
    %16 = arith.subf %10, %15 : vector<16x128xf32>
    %17 = arith.mulf %16, %16 : vector<16x128xf32>
    %cst_10 = arith.constant dense<0.000000e+00> : vector<128xf32>
    %18 = vector.multi_reduction <add>, %17, %cst_10 [0] : vector<16x128xf32> to vector<128xf32>
    %19 = vector.shape_cast %18 : vector<128xf32> to vector<1x128xf32>
    %cst_11 = arith.constant 1.600000e+01 : f32
    %20 = vector.broadcast %cst_11 : f32 to vector<1x128xf32>
    %21 = arith.divf %19, %20 : vector<1x128xf32>
    %cst_12 = arith.constant 1.000000e-03 : f32
    %22 = vector.broadcast %cst_12 : f32 to vector<1x128xf32>
    %23 = arith.addf %21, %22 : vector<1x128xf32>
    %24 = math.rsqrt %23 : vector<1x128xf32>
    %25 = vector.broadcast %24 : vector<1x128xf32> to vector<16x128xf32>
    %26 = arith.mulf %16, %25 : vector<16x128xf32>
    %c0_13 = arith.constant 0 : index
    %c0_14 = arith.constant 0 : index
    %27 = vector.load %arg3[%c0_13, %c0_14] : memref<1x128xf32, #tpu.memory_space<vmem>>, vector<1x128xf32>
    %28 = vector.broadcast %27 : vector<1x128xf32> to vector<16x128xf32>
    %29 = arith.mulf %26, %28 : vector<16x128xf32>
    %c0_15 = arith.constant 0 : index
    %c0_16 = arith.constant 0 : index
    %30 = vector.load %arg4[%c0_15, %c0_16] : memref<1x128xf32, #tpu.memory_space<vmem>>, vector<1x128xf32>
    %31 = vector.broadcast %30 : vector<1x128xf32> to vector<16x128xf32>
    %32 = arith.addf %29, %31 : vector<16x128xf32>
    %cst_17 = arith.constant 0.000000e+00 : f32
    %33 = vector.broadcast %cst_17 : f32 to vector<16x128xf32>
    %34 = arith.cmpf oge, %32, %33 : vector<16x128xf32>
    %cst_18 = arith.constant 2.000000e-01 : f32
    %35 = vector.broadcast %cst_18 : f32 to vector<16x128xf32>
    %36 = arith.mulf %35, %32 : vector<16x128xf32>
    %37 = arith.select %34, %32, %36 : vector<16x128xi1>, vector<16x128xf32>
    %c0_19 = arith.constant 0 : index
    %c0_20 = arith.constant 0 : index
    %c0_21 = arith.constant 0 : index
    %38 = vector.load %arg5[%c0_19, %c0_20, %c0_21] : memref<1x16x128xf32, #tpu.memory_space<vmem>>, vector<1x16x128xf32>
    %39 = vector.shape_cast %38 : vector<1x16x128xf32> to vector<16x128xf32>
    %40 = vector.shape_cast %37 : vector<16x128xf32> to vector<1x16x128xf32>
    tpu.vector_store %arg5[%c0_19, %c0_20, %c0_21], %40 {strides = array<i32>} : memref<1x16x128xf32, #tpu.memory_space<vmem>>, vector<1x16x128xf32>,
    return
  }
  func.func @transform_0(%arg0: i32) -> (i32, i32, i32) {
    %c0_i32 = arith.constant 0 : i32
    %c0_i32_0 = arith.constant 0 : i32
    %c0_i32_1 = arith.constant 0 : i32
    return %arg0, %c0_i32, %c0_i32_0 : i32, i32, i32
  }
  func.func @transform_1(%arg0: i32) -> (i32, i32, i32) {
    %c0_i32 = arith.constant 0 : i32
    %c0_i32_0 = arith.constant 0 : i32
    %c0_i32_1 = arith.constant 0 : i32
    %c0_i32_2 = arith.constant 0 : i32
    return %c0_i32, %c0_i32_0, %c0_i32_1 : i32, i32, i32
  }
  func.func @transform_2(%arg0: i32) -> (i32, i32) {
    %c0_i32 = arith.constant 0 : i32
    %c0_i32_0 = arith.constant 0 : i32
    %c0_i32_1 = arith.constant 0 : i32
    return %c0_i32, %c0_i32_0 : i32, i32
  }
  func.func @transform_3(%arg0: i32) -> (i32, i32) {
    %c0_i32 = arith.constant 0 : i32
    %c0_i32_0 = arith.constant 0 : i32
    %c0_i32_1 = arith.constant 0 : i32
    return %c0_i32, %c0_i32_0 : i32, i32
  }
  func.func @transform_4(%arg0: i32) -> (i32, i32, i32) {
    %c0_i32 = arith.constant 0 : i32
    %c0_i32_0 = arith.constant 0 : i32
    %c0_i32_1 = arith.constant 0 : i32
    return %arg0, %c0_i32, %c0_i32_0 : i32, i32, i32
  }
}

</mosaic_0001>

<llo_original>
// kernel: adversarial_network_forward.2
$region0: #{adversarial_network_forward.2}
  #allocation0 [shape = 'u32[]', space=smem, size = 0x4, offset = 0x4, fixed_abs, tag = 'smem constant byte address 0x4 - core index']
  #allocation1 [shape = 'u32[144,128]{1,0:T(1,128)}', space=vmem, size = 0x12000, scoped, tag = 'internal scratch']
  %s0 = inlined_call_operand.vmem [shape: f32[2,36,64], index: 0, kind: input, shape index: {}]
  %s1 = inlined_call_operand.vmem [shape: f32[2,64,128], index: 1, kind: input, shape index: {}]
  %s2 = inlined_call_operand.vmem [shape: f32[1,128], index: 2, kind: input, shape index: {}]
  %s3 = inlined_call_operand.vmem [shape: f32[2,32,128], index: 3, kind: output, shape index: {}]
  %s4 = sld [smem:[#allocation0]]
  $region45: #{adversarial_network_forward.2} parent=0
    _
  %s6 = ssub.s32 1, %s4
  %s7 = scalar_select 0, %s6, %s4
  loop: start=0, step=1, limit=4
  $region2: #{adversarial_network_forward.2} parent=0 // loop_pre_header
    _
  $region3: #{adversarial_network_forward.2} parent=0 // loop_header
    %s9 = sphi 0, %s13
    %p10 = scmp.ge.s32.totalorder %s9, 4
    %s19 = sphi 0, %s21
    %s22 = sphi 0, %s19
    %s23 = sphi 0, %s22
    %s39 = sphi 0, %s23
    %s43 = sphi 0, %s43
    %s45 = sphi 0, %s43
    %s46 = sphi 0, %s45
    %s60 = sphi 0, %s46
    %s64 = sphi 0, %s64
    %s66 = sphi 0, %s64
    %s67 = sphi 0, %s66
    %s81 = sphi 0, %s67
    %s87 = sphi 0, %s89
    %s90 = sphi 0, %s87
    %s91 = sphi 0, %s90
    %s107 = sphi 0, %s91
  $region4: #{adversarial_network_forward.2} parent=0 // loop_header_branch
    %12 = sbr.rel (%p10) target = $region8
  $region5: #{adversarial_network_forward.2} parent=0 // loop_body
    %s14 = ssub.s32 %s9, 1
    %s15 = ssub.s32 %s9, 2
    %s16 = sadd.s32 %s9, 1
    %s17 = ssub.s32 %s9, %s16
    %p18 = scmp.eq.s32.totalorder %s17, 0
    %s20 = sadd.s32 %s19, 1
    %s21 = scalar_select %p18, %s19, %s20
    %p24 = pneg %p18
    %p25 = scmp.eq.s32.totalorder %s9, 1
    %p26 = por %p24, %p25
    %p27 = scmp.ne.s32.totalorder %s19, %s22
    %p28 = scmp.eq.s32.totalorder %s9, 0
    %p29 = por %p27, %p28
    %p30 = scmp.ne.s32.totalorder %s19, %s22
    %p31 = scmp.eq.s32.totalorder %s14, 1
    %p32 = por %p30, %p31
    %p33 = scmp.ne.s32.totalorder %s22, %s23
    %p34 = scmp.eq.s32.totalorder %s14, 0
    %p35 = por %p33, %p34
    %p36 = scmp.ne.s32.totalorder %s22, %s23
    %p37 = scmp.eq.s32.totalorder %s15, 1
    %p38 = por %p36, %p37
    %p40 = scmp.ne.s32.totalorder %s23, %s39
    %p41 = scmp.eq.s32.totalorder %s15, 0
    %p42 = por %p40, %p41
    %s44 = sadd.s32 %s43, 1
    %p47 = scmp.eq.s32.totalorder %s9, 1
    %p48 = scmp.ne.s32.totalorder %s43, %s45
    %p49 = scmp.eq.s32.totalorder %s9, 0
    %p50 = por %p48, %p49
    %p51 = scmp.ne.s32.totalorder %s43, %s45
    %p52 = scmp.eq.s32.totalorder %s14, 1
    %p53 = por %p51, %p52
    %p54 = scmp.ne.s32.totalorder %s45, %s46
    %p55 = scmp.eq.s32.totalorder %s14, 0
    %p56 = por %p54, %p55
    %p57 = scmp.ne.s32.totalorder %s45, %s46
    %p58 = scmp.eq.s32.totalorder %s15, 1
    %p59 = por %p57, %p58
    %p61 = scmp.ne.s32.totalorder %s46, %s60
    %p62 = scmp.eq.s32.totalorder %s15, 0
    %p63 = por %p61, %p62
    %s65 = sadd.s32 %s64, 1
    %p68 = scmp.eq.s32.totalorder %s9, 1
    %p69 = scmp.ne.s32.totalorder %s64, %s66
    %p70 = scmp.eq.s32.totalorder %s9, 0
    %p71 = por %p69, %p70
    %p72 = scmp.ne.s32.totalorder %s64, %s66
    %p73 = scmp.eq.s32.totalorder %s14, 1
    %p74 = por %p72, %p73
    %p75 = scmp.ne.s32.totalorder %s66, %s67
    %p76 = scmp.eq.s32.totalorder %s14, 0
    %p77 = por %p75, %p76
    %p78 = scmp.ne.s32.totalorder %s66, %s67
    %p79 = scmp.eq.s32.totalorder %s15, 1
    %p80 = por %p78, %p79
    %p82 = scmp.ne.s32.totalorder %s67, %s81
    %p83 = scmp.eq.s32.totalorder %s15, 0
    %p84 = por %p82, %p83
    %s85 = ssub.s32 %s9, %s16
    %p86 = scmp.eq.s32.totalorder %s85, 0
    %s88 = sadd.s32 %s87, 1
    %s89 = scalar_select %p86, %s87, %s88
    %p92 = pneg %p86
    %p93 = scmp.eq.s32.totalorder %s9, 1
    %p94 = por %p92, %p93
    %p95 = scmp.ne.s32.totalorder %s87, %s90
    %p96 = scmp.eq.s32.totalorder %s9, 0
    %p97 = por %p95, %p96
    %p98 = scmp.ne.s32.totalorder %s87, %s90
    %p99 = scmp.eq.s32.totalorder %s14, 1
    %p100 = por %p98, %p99
    %p101 = scmp.ne.s32.totalorder %s90, %s91
    %p102 = scmp.eq.s32.totalorder %s14, 0
    %p103 = por %p101, %p102
    %p104 = scmp.ne.s32.totalorder %s90, %s91
    %p105 = scmp.eq.s32.totalorder %s15, 1
    %p106 = por %p104, %p105
    %p108 = scmp.ne.s32.totalorder %s91, %s107
    %p109 = scmp.eq.s32.totalorder %s15, 0
    %p110 = por %p108, %p109
    %p111 = scmp.le.s32.totalorder 1, %s9
    %p112 = scmp.lt.s32.totalorder %s9, 3
    %p113 = pnand %p111, %p112
    %p114 = pneg %p113
    // Predicated region
    $region9: #{adversarial_network_forward.2} parent=5 // pred_check
      _
    $region10: #{adversarial_network_forward.2} parent=5 // pred_check_branch
      %116 = sbr.rel (%p113) target = $region12
    $region11: #{adversarial_network_forward.2} parent=5 // pred_region
      %s117 = ssub.s32 %s9, 1
      // Predicated region
      $region13: #{adversarial_network_forward.2} parent=11 // pred_check
        %p118 = pneg %p56
      $region14: #{adversarial_network_forward.2} parent=11 // pred_check_branch
        %120 = sbr.rel (%p118) target = $region16
      $region15: #{adversarial_network_forward.2} parent=11 // pred_region
        _
      $region16: #{adversarial_network_forward.2} parent=11 // pred_fallthru
        _
      // Predicated region
      $region17: #{adversarial_network_forward.2} parent=11 // pred_check
        %p121 = pneg %p77
      $region18: #{adversarial_network_forward.2} parent=11 // pred_check_branch
        %123 = sbr.rel (%p121) target = $region20
      $region19: #{adversarial_network_forward.2} parent=11 // pred_region
        _
      $region20: #{adversarial_network_forward.2} parent=11 // pred_fallthru
        _
    $region12: #{adversarial_network_forward.2} parent=5 // pred_fallthru
      _
    %p124 = scmp.lt.s32.totalorder %s9, 2
    // Predicated region
    $region21: #{adversarial_network_forward.2} parent=5 // pred_check
      %p125 = pneg %p124
    $region22: #{adversarial_network_forward.2} parent=5 // pred_check_branch
      %127 = sbr.rel (%p125) target = $region24
    $region23: #{adversarial_network_forward.2} parent=5 // pred_region
      // Predicated region
      $region25: #{adversarial_network_forward.2} parent=23 // pred_check
        %p128 = pneg %p29
      $region26: #{adversarial_network_forward.2} parent=23 // pred_check_branch
        %130 = sbr.rel (%p128) target = $region28
      $region27: #{adversarial_network_forward.2} parent=23 // pred_region
        %p131 = scmp.lt.s32.totalorder %s9, 1
        %s132 = scalar_select %p131, %s9, 1
        %s133 = smul.addr %s132, 5
        %s134 = smul.addr %s133, 8
        %s135 = scalar_lea.vmem %s0, %s134
      $region28: #{adversarial_network_forward.2} parent=23 // pred_fallthru
        _
    $region24: #{adversarial_network_forward.2} parent=5 // pred_fallthru
      _
    %p136 = scmp.le.s32.totalorder 1, %s9
    %p137 = scmp.lt.s32.totalorder %s9, 3
    %p138 = pnand %p136, %p137
    %p139 = pneg %p138
    // Predicated region
    $region29: #{adversarial_network_forward.2} parent=5 // pred_check
      _
    $region30: #{adversarial_network_forward.2} parent=5 // pred_check_branch
      %141 = sbr.rel (%p138) target = $region32
    $region31: #{adversarial_network_forward.2} parent=5 // pred_region
      %s142 = ssub.s32 %s9, 1
      %p143 = scmp.lt.s32.totalorder %s14, 1
      %s144 = scalar_select %p143, %s14, 1
      %s145 = smul.addr %s144, 5
      %s146 = smul.addr %s145, 8
      %s147 = scalar_lea.vmem %s0, %s146
      %p148 = pneg %p35
      %p149 = pneg %p32
      %p150 = pneg %p56
      %p151 = pneg %p53
      %p152 = pneg %p77
      %p153 = pneg %p74
      %p154 = pneg %p103
      %p155 = pneg %p100
      %p156 = scmp.lt.s32.totalorder %s14, 1
      %s157 = scalar_select %p156, %s14, 1
      %s158 = smul.addr %s157, 4
      %s159 = smul.addr %s158, 8
      %s160 = scalar_lea.vmem %s3, %s159
      %p161 = scmp.lt.s32.totalorder %s14, 1
      %s162 = scalar_select %p161, %s14, 1
      %s163 = smul.addr %s162, 5
      %s164 = smul.addr %s163, 8
      %s165 = scalar_lea.vmem %s0, %s164
      %p166 = scmp.lt.s32.totalorder %s14, 1
      %s167 = scalar_select %p166, %s14, 1
      %s168 = smul.addr %s167, 4
      %s169 = smul.addr %s168, 8
      %s170 = scalar_lea.vmem %s3, %s169
      %v171 = vld [vmem:[%s165] sm:$0xff]
      %v172 = vld [vmem:[%s165 + $0x8] sm:$0xff]
      %v173 = vld [vmem:[%s165 + $0x10] sm:$0xff]
      %v174 = vld [vmem:[%s165 + $0x18] sm:$0xff]
      %v175 = vld [vmem:[%s165 + $0x20] sm:$0xf]
      %v176 = vld [vmem:[%s1] sm:$0xff]
      %v177 = vld [vmem:[%s1 + $0x8] sm:$0xff]
      %v178 = vld [vmem:[%s1 + $0x10] sm:$0xff]
      %v179 = vld [vmem:[%s1 + $0x18] sm:$0xff]
      %v180 = vld [vmem:[%s1 + $0x20] sm:$0xff]
      %v181 = vld [vmem:[%s1 + $0x28] sm:$0xff]
      %v182 = vld [vmem:[%s1 + $0x30] sm:$0xff]
      %v183 = vld [vmem:[%s1 + $0x38] sm:$0xff]
      %s184 = scalar_lea.vmem %s1, 64
      %v185 = vld [vmem:[%s184] sm:$0xff]
      %v186 = vld [vmem:[%s184 + $0x8] sm:$0xff]
      %v187 = vld [vmem:[%s184 + $0x10] sm:$0xff]
      %v188 = vld [vmem:[%s184 + $0x18] sm:$0xff]
      %v189 = vld [vmem:[%s184 + $0x20] sm:$0xff]
      %v190 = vld [vmem:[%s184 + $0x28] sm:$0xff]
      %v191 = vld [vmem:[%s184 + $0x30] sm:$0xff]
      %v192 = vld [vmem:[%s184 + $0x38] sm:$0xff]
      %vm198 = vcmask 1043456
      %v199 = vrot.slane %v171, 4
      %v200 = vrot.slane %v172, 4
      %v201 = vsel %vm198, %v199, %v200
      %v202 = vrot.slane %v173, 4
      %v203 = vsel %vm198, %v200, %v202
      %v204 = vrot.slane %v174, 4
      %v205 = vsel %vm198, %v202, %v204
      %v206 = vrot.slane %v175, 4
      %v207 = vsel %vm198, %v204, %v206
      %vm208 = vcmask 523264
      %v209 = vsel %vm208, %v201, 0
      %v211 = vsel %vm208, %v203, 0
      %v213 = vsel %vm208, %v205, 0
      %v215 = vsel %vm208, %v207, 0
      %217 = vmatprep.subr.mxu0 0.0
      %218 = vmatpush1.msra.mxu0 0.0
      %219 = vmatprep.subr.mxu0 0.0
      %220 = vmatpush1.msra.mxu0 0.0
      %221 = vmatprep.subr.mxu0 0.0
      %222 = vmatpush1.msra.mxu0 0.0
      %223 = vmatprep.subr.mxu0 0.0
      %224 = vmatpush1.msra.mxu0 0.0
      %225 = vmatprep.subr.mxu0 0.0
      %226 = vmatpush1.msra.mxu0 0.0
      %227 = vmatprep.subr.mxu0 0.0
      %228 = vmatpush1.msra.mxu0 0.0
      %229 = vmatprep.subr.mxu0 0.0
      %230 = vmatpush1.msra.mxu0 0.0
      %231 = vmatprep.subr.mxu0 0.0
      %232 = vmatpush1.msra.mxu0 0.0
      %233 = vmatprep.subr.mxu0 0.0
      %234 = vmatpush1.msra.mxu0 %v192
      %235 = vmatprep.subr.mxu0 0.0
      %236 = vmatpush1.msra.mxu0 %v191
      %237 = vmatprep.subr.mxu0 0.0
      %238 = vmatpush1.msra.mxu0 %v190
      %239 = vmatprep.subr.mxu0 0.0
      %240 = vmatpush1.msra.mxu0 %v189
      %241 = vmatprep.subr.mxu0 0.0
      %242 = vmatpush1.msra.mxu0 %v188
      %243 = vmatprep.subr.mxu0 0.0
      %244 = vmatpush1.msra.mxu0 %v187
      %245 = vmatprep.subr.mxu0 0.0
      %246 = vmatpush1.msra.mxu0 %v186
      %247 = vmatprep.subr.mxu0 0.0
      %248 = vmatpush1.msra.mxu0 %v185
      %249 = vmatprep.subr.mxu0 0.0
      %250 = vmatpush2.msra.mxu0 0.0
      %251 = vmatprep.subr.mxu0 0.0
      %252 = vmatpush2.msra.mxu0 0.0
      %253 = vmatprep.subr.mxu0 0.0
      %254 = vmatpush2.msra.mxu0 0.0
      %255 = vmatprep.subr.mxu0 0.0
      %256 = vmatpush2.msra.mxu0 0.0
      %257 = vmatprep.subr.mxu0 0.0
      %258 = vmatpush2.msra.mxu0 0.0
      %259 = vmatprep.subr.mxu0 0.0
      %260 = vmatpush2.msra.mxu0 0.0
      %261 = vmatprep.subr.mxu0 0.0
      %262 = vmatpush2.msra.mxu0 0.0
      %263 = vmatprep.subr.mxu0 0.0
      %264 = vmatpush2.msra.mxu0 0.0
      %265 = vmatprep.subr.mxu0 0.0
      %266 = vmatpush2.msra.mxu0 0.0
      %267 = vmatprep.subr.mxu0 0.0
      %268 = vmatpush2.msra.mxu0 0.0
      %269 = vmatprep.subr.mxu0 0.0
      %270 = vmatpush2.msra.mxu0 0.0
      %271 = vmatprep.subr.mxu0 0.0
      %272 = vmatpush2.msra.mxu0 0.0
      %273 = vmatprep.subr.mxu0 0.0
      %274 = vmatpush2.msra.mxu0 0.0
      %275 = vmatprep.subr.mxu0 0.0
      %276 = vmatpush2.msra.mxu0 0.0
      %277 = vmatprep.subr.mxu0 0.0
      %278 = vmatpush2.msra.mxu0 0.0
      %279 = vmatprep.subr.mxu0 0.0
      %280 = vmatpush2.msra.mxu0 0.0
      %281 = vmatprep.mubr.f32.mxu0 0.0
      %282 = vmatmul.mubr.f32.gmra.mxu0 %v209
      %v283 = vpop.f32.mrf.mxu0
      %v284 = vadd.f32 0.0, %v283
      %v285 = vpop.f32.mrf.mxu0
      %286 = vmatprep.mubr.f32.mxu0 0.0
      %287 = vmatmul.mubr.f32.gmra.mxu0 %v211
      %v288 = vpop.f32.mrf.mxu0
      %v289 = vadd.f32 0.0, %v288
      %v290 = vpop.f32.mrf.mxu0
      %291 = vmatprep.mubr.f32.mxu0 0.0
      %292 = vmatmul.mubr.f32.gmra.mxu0 %v213
      %v293 = vpop.f32.mrf.mxu0
      %v294 = vadd.f32 0.0, %v293
      %v295 = vpop.f32.mrf.mxu0
      %296 = vmatprep.mubr.f32.mxu0 0.0
      %297 = vmatmul.mubr.f32.gmra.mxu0 %v215
      %v298 = vpop.f32.mrf.mxu0
      %v299 = vadd.f32 0.0, %v298
      %v300 = vpop.f32.mrf.mxu0
      %301 = vdwg.mxu0
      %v302 = vsel %vm208, %v171, 0
      %v304 = vsel %vm208, %v172, 0
      %v306 = vsel %vm208, %v173, 0
      %v308 = vsel %vm208, %v174, 0
      %310 = vmatprep.subr.mxu0 0.0
      %311 = vmatpush1.msra.mxu0 0.0
      %312 = vmatprep.subr.mxu0 0.0
      %313 = vmatpush1.msra.mxu0 0.0
      %314 = vmatprep.subr.mxu0 0.0
      %315 = vmatpush1.msra.mxu0 0.0
      %316 = vmatprep.subr.mxu0 0.0
      %317 = vmatpush1.msra.mxu0 0.0
      %318 = vmatprep.subr.mxu0 0.0
      %319 = vmatpush1.msra.mxu0 0.0
      %320 = vmatprep.subr.mxu0 0.0
      %321 = vmatpush1.msra.mxu0 0.0
      %322 = vmatprep.subr.mxu0 0.0
      %323 = vmatpush1.msra.mxu0 0.0
      %324 = vmatprep.subr.mxu0 0.0
      %325 = vmatpush1.msra.mxu0 0.0
      %326 = vmatprep.subr.mxu0 0.0
      %327 = vmatpush1.msra.mxu0 %v183
      %328 = vmatprep.subr.mxu0 0.0
      %329 = vmatpush1.msra.mxu0 %v182
      %330 = vmatprep.subr.mxu0 0.0
      %331 = vmatpush1.msra.mxu0 %v181
      %332 = vmatprep.subr.mxu0 0.0
      %333 = vmatpush1.msra.mxu0 %v180
      %334 = vmatprep.subr.mxu0 0.0
      %335 = vmatpush1.msra.mxu0 %v179
      %336 = vmatprep.subr.mxu0 0.0
      %337 = vmatpush1.msra.mxu0 %v178
      %338 = vmatprep.subr.mxu0 0.0
      %339 = vmatpush1.msra.mxu0 %v177
      %340 = vmatprep.subr.mxu0 0.0
      %341 = vmatpush1.msra.mxu0 %v176
      %342 = vmatprep.subr.mxu0 0.0
      %343 = vmatpush2.msra.mxu0 0.0
      %344 = vmatprep.subr.mxu0 0.0
      %345 = vmatpush2.msra.mxu0 0.0
      %346 = vmatprep.subr.mxu0 0.0
      %347 = vmatpush2.msra.mxu0 0.0
      %348 = vmatprep.subr.mxu0 0.0
      %349 = vmatpush2.msra.mxu0 0.0
      %350 = vmatprep.subr.mxu0 0.0
      %351 = vmatpush2.msra.mxu0 0.0
      %352 = vmatprep.subr.mxu0 0.0
      %353 = vmatpush2.msra.mxu0 0.0
      %354 = vmatprep.subr.mxu0 0.0
      %355 = vmatpush2.msra.mxu0 0.0
      %356 = vmatprep.subr.mxu0 0.0
      %357 = vmatpush2.msra.mxu0 0.0
      %358 = vmatprep.subr.mxu0 0.0
      %359 = vmatpush2.msra.mxu0 0.0
      %360 = vmatprep.subr.mxu0 0.0
      %361 = vmatpush2.msra.mxu0 0.0
      %362 = vmatprep.subr.mxu0 0.0
      %363 = vmatpush2.msra.mxu0 0.0
      %364 = vmatprep.subr.mxu0 0.0
      %365 = vmatpush2.msra.mxu0 0.0
      %366 = vmatprep.subr.mxu0 0.0
      %367 = vmatpush2.msra.mxu0 0.0
      %368 = vmatprep.subr.mxu0 0.0
      %369 = vmatpush2.msra.mxu0 0.0
      %370 = vmatprep.subr.mxu0 0.0
      %371 = vmatpush2.msra.mxu0 0.0
      %372 = vmatprep.subr.mxu0 0.0
      %373 = vmatpush2.msra.mxu0 0.0
      %374 = vmatprep.mubr.f32.mxu0 0.0
      %375 = vmatmul.mubr.f32.gmra.mxu0 %v302
      %v376 = vpop.f32.mrf.mxu0
      %v377 = vadd.f32 %v284, %v376
      %v378 = vpop.f32.mrf.mxu0
      %379 = vmatprep.mubr.f32.mxu0 0.0
      %380 = vmatmul.mubr.f32.gmra.mxu0 %v304
      %v381 = vpop.f32.mrf.mxu0
      %v382 = vadd.f32 %v289, %v381
      %v383 = vpop.f32.mrf.mxu0
      %384 = vmatprep.mubr.f32.mxu0 0.0
      %385 = vmatmul.mubr.f32.gmra.mxu0 %v306
      %v386 = vpop.f32.mrf.mxu0
      %v387 = vadd.f32 %v294, %v386
      %v388 = vpop.f32.mrf.mxu0
      %389 = vmatprep.mubr.f32.mxu0 0.0
      %390 = vmatmul.mubr.f32.gmra.mxu0 %v308
      %v391 = vpop.f32.mrf.mxu0
      %v392 = vadd.f32 %v299, %v391
      %v393 = vpop.f32.mrf.mxu0
      %394 = vdwg.mxu0
      %v395 = vld [vmem:[%s2] sm:$0x1]
      %v397 = vlaneseq
      %v398 = vshrl.u32 %v397, 7
      %v399 = vsub.s32 0, %v398
      %v400 = vrot.slane %v395, %v399
      %v402 = vadd.f32 %v377, %v400
      %v403 = vadd.f32 %v382, %v400
      %v404 = vadd.f32 %v387, %v400
      %v405 = vadd.f32 %v392, %v400
      %vm406 = vcmp.ge.f32.partialorder %v402, 0.0
      %vm407 = vcmp.ge.f32.partialorder %v403, 0.0
      %vm408 = vcmp.ge.f32.partialorder %v404, 0.0
      %vm409 = vcmp.ge.f32.partialorder %v405, 0.0
      %v410 = vmul.f32 %v402, 0.2
      %v411 = vmul.f32 %v403, 0.2
      %v412 = vmul.f32 %v404, 0.2
      %v413 = vmul.f32 %v405, 0.2
      %v414 = vsel %vm406, %v402, %v410
      %v415 = vsel %vm407, %v403, %v411
      %v416 = vsel %vm408, %v404, %v412
      %v417 = vsel %vm409, %v405, %v413
      %418 = vst [vmem:[%s170] sm:$0xff] %v414
      %419 = vst [vmem:[%s170 + $0x8] sm:$0xff] %v415
      %420 = vst [vmem:[%s170 + $0x10] sm:$0xff] %v416
      %421 = vst [vmem:[%s170 + $0x18] sm:$0xff] %v417
      %p422 = scmp.lt.s32.totalorder %s14, 1
      %s423 = scalar_select %p422, %s14, 1
      %s424 = smul.addr %s423, 4
      %s425 = smul.addr %s424, 8
      %s426 = scalar_lea.vmem %s3, %s425
      // Predicated region
      $region33: #{adversarial_network_forward.2} parent=31 // pred_check
        %p427 = pneg %p100
      $region34: #{adversarial_network_forward.2} parent=31 // pred_check_branch
        %429 = sbr.rel (%p427) target = $region36
      $region35: #{adversarial_network_forward.2} parent=31 // pred_region
        _
      $region36: #{adversarial_network_forward.2} parent=31 // pred_fallthru
        _
    $region32: #{adversarial_network_forward.2} parent=5 // pred_fallthru
      _
    %p430 = scmp.le.s32.totalorder 2, %s9
    // Predicated region
    $region37: #{adversarial_network_forward.2} parent=5 // pred_check
      %p431 = pneg %p430
    $region38: #{adversarial_network_forward.2} parent=5 // pred_check_branch
      %433 = sbr.rel (%p431) target = $region40
    $region39: #{adversarial_network_forward.2} parent=5 // pred_region
      %s434 = ssub.s32 %s9, 2
      // Predicated region
      $region41: #{adversarial_network_forward.2} parent=39 // pred_check
        %p435 = pneg %p106
      $region42: #{adversarial_network_forward.2} parent=39 // pred_check_branch
        %437 = sbr.rel (%p435) target = $region44
      $region43: #{adversarial_network_forward.2} parent=39 // pred_region
        %p438 = scmp.lt.s32.totalorder %s15, 1
        %s439 = scalar_select %p438, %s15, 1
        %s440 = smul.addr %s439, 4
        %s441 = smul.addr %s440, 8
        %s442 = scalar_lea.vmem %s3, %s441
      $region44: #{adversarial_network_forward.2} parent=39 // pred_fallthru
        _
    $region40: #{adversarial_network_forward.2} parent=5 // pred_fallthru
      _
  $region6: #{adversarial_network_forward.2} parent=0 // loop_footer
    %s13 = sadd.s32 1, %s9
  $region7: #{adversarial_network_forward.2} parent=0 // loop_footer_branch
    %8 = sbr.rel target = $region3
  $region8: #{adversarial_network_forward.2} parent=0 // loop_exit
    _

// kernel: adversarial_network_forward.3
$region0: #{adversarial_network_forward.3}
  #allocation0 [shape = 'u32[]', space=smem, size = 0x4, offset = 0x4, fixed_abs, tag = 'smem constant byte address 0x4 - core index']
  #allocation1 [shape = 'u32[144,128]{1,0:T(1,128)}', space=vmem, size = 0x12000, scoped, tag = 'internal scratch']
  %s0 = inlined_call_operand.vmem [shape: f32[2,20,512], index: 0, kind: input, shape index: {}]
  %s1 = inlined_call_operand.vmem [shape: f32[2,512,128], index: 1, kind: input, shape index: {}]
  %s2 = inlined_call_operand.vmem [shape: f32[1,128], index: 2, kind: input, shape index: {}]
  %s3 = inlined_call_operand.vmem [shape: f32[1,128], index: 3, kind: input, shape index: {}]
  %s4 = inlined_call_operand.hbm [shape: f32[2,16,128], index: 4, kind: output, shape index: {}]
  %s5 = sld [smem:[#allocation0]]
  $region49: #{adversarial_network_forward.3} parent=0
    _
  %s7 = ssub.s32 1, %s5
  %s8 = scalar_select 0, %s7, %s5
  $region1: #{adversarial_network_forward.3} parent=0
    #allocation2 [shape = 'u8[16384]{0}', space=vmem, size = 0x4000, scoped, tag = 'output window, operand 0']
    #allocation3 [shape = 's32[2]{0}', space=sflag, size = 0x8, scoped, tag = 'scoped memory for adversarial_network_forward.3']
    %9 = vsyncpa [#allocation3], 0
    %s10 = scalar_lea.sflag [#allocation3], 1
    %11 = vsyncpa %s10, 0
    loop: start=0, step=1, limit=4
    $region2: #{adversarial_network_forward.3} parent=1 // loop_pre_header
      _
    $region3: #{adversarial_network_forward.3} parent=1 // loop_header
      %s13 = sphi 0, %s17
      %p14 = scmp.ge.s32.totalorder %s13, 4
      %s23 = sphi 0, %s25
      %s26 = sphi 0, %s23
      %s27 = sphi 0, %s26
      %s43 = sphi 0, %s27
      %s47 = sphi 0, %s47
      %s49 = sphi 0, %s47
      %s50 = sphi 0, %s49
      %s64 = sphi 0, %s50
      %s68 = sphi 0, %s68
      %s70 = sphi 0, %s68
      %s71 = sphi 0, %s70
      %s85 = sphi 0, %s71
      %s89 = sphi 0, %s89
      %s91 = sphi 0, %s89
      %s92 = sphi 0, %s91
      %s106 = sphi 0, %s92
      %s112 = sphi 0, %s114
      %s115 = sphi 0, %s112
      %s116 = sphi 0, %s115
      %s132 = sphi 0, %s116
    $region4: #{adversarial_network_forward.3} parent=1 // loop_header_branch
      %16 = sbr.rel (%p14) target = $region8
    $region5: #{adversarial_network_forward.3} parent=1 // loop_body
      %s18 = ssub.s32 %s13, 1
      %s19 = ssub.s32 %s13, 2
      %s20 = sadd.s32 %s13, 1
      %s21 = ssub.s32 %s13, %s20
      %p22 = scmp.eq.s32.totalorder %s21, 0
      %s24 = sadd.s32 %s23, 1
      %s25 = scalar_select %p22, %s23, %s24
      %p28 = pneg %p22
      %p29 = scmp.eq.s32.totalorder %s13, 1
      %p30 = por %p28, %p29
      %p31 = scmp.ne.s32.totalorder %s23, %s26
      %p32 = scmp.eq.s32.totalorder %s13, 0
      %p33 = por %p31, %p32
      %p34 = scmp.ne.s32.totalorder %s23, %s26
      %p35 = scmp.eq.s32.totalorder %s18, 1
      %p36 = por %p34, %p35
      %p37 = scmp.ne.s32.totalorder %s26, %s27
      %p38 = scmp.eq.s32.totalorder %s18, 0
      %p39 = por %p37, %p38
      %p40 = scmp.ne.s32.totalorder %s26, %s27
      %p41 = scmp.eq.s32.totalorder %s19, 1
      %p42 = por %p40, %p41
      %p44 = scmp.ne.s32.totalorder %s27, %s43
      %p45 = scmp.eq.s32.totalorder %s19, 0
      %p46 = por %p44, %p45
      %s48 = sadd.s32 %s47, 1
      %p51 = scmp.eq.s32.totalorder %s13, 1
      %p52 = scmp.ne.s32.totalorder %s47, %s49
      %p53 = scmp.eq.s32.totalorder %s13, 0
      %p54 = por %p52, %p53
      %p55 = scmp.ne.s32.totalorder %s47, %s49
      %p56 = scmp.eq.s32.totalorder %s18, 1
      %p57 = por %p55, %p56
      %p58 = scmp.ne.s32.totalorder %s49, %s50
      %p59 = scmp.eq.s32.totalorder %s18, 0
      %p60 = por %p58, %p59
      %p61 = scmp.ne.s32.totalorder %s49, %s50
      %p62 = scmp.eq.s32.totalorder %s19, 1
      %p63 = por %p61, %p62
      %p65 = scmp.ne.s32.totalorder %s50, %s64
      %p66 = scmp.eq.s32.totalorder %s19, 0
      %p67 = por %p65, %p66
      %s69 = sadd.s32 %s68, 1
      %p72 = scmp.eq.s32.totalorder %s13, 1
      %p73 = scmp.ne.s32.totalorder %s68, %s70
      %p74 = scmp.eq.s32.totalorder %s13, 0
      %p75 = por %p73, %p74
      %p76 = scmp.ne.s32.totalorder %s68, %s70
      %p77 = scmp.eq.s32.totalorder %s18, 1
      %p78 = por %p76, %p77
      %p79 = scmp.ne.s32.totalorder %s70, %s71
      %p80 = scmp.eq.s32.totalorder %s18, 0
      %p81 = por %p79, %p80
      %p82 = scmp.ne.s32.totalorder %s70, %s71
      %p83 = scmp.eq.s32.totalorder %s19, 1
      %p84 = por %p82, %p83
      %p86 = scmp.ne.s32.totalorder %s71, %s85
      %p87 = scmp.eq.s32.totalorder %s19, 0
      %p88 = por %p86, %p87
      %s90 = sadd.s32 %s89, 1
      %p93 = scmp.eq.s32.totalorder %s13, 1
      %p94 = scmp.ne.s32.totalorder %s89, %s91
      %p95 = scmp.eq.s32.totalorder %s13, 0
      %p96 = por %p94, %p95
      %p97 = scmp.ne.s32.totalorder %s89, %s91
      %p98 = scmp.eq.s32.totalorder %s18, 1
      %p99 = por %p97, %p98
      %p100 = scmp.ne.s32.totalorder %s91, %s92
      %p101 = scmp.eq.s32.totalorder %s18, 0
      %p102 = por %p100, %p101
      %p103 = scmp.ne.s32.totalorder %s91, %s92
      %p104 = scmp.eq.s32.totalorder %s19, 1
      %p105 = por %p103, %p104
      %p107 = scmp.ne.s32.totalorder %s92, %s106
      %p108 = scmp.eq.s32.totalorder %s19, 0
      %p109 = por %p107, %p108
      %s110 = ssub.s32 %s13, %s20
      %p111 = scmp.eq.s32.totalorder %s110, 0
      %s113 = sadd.s32 %s112, 1
      %s114 = scalar_select %p111, %s112, %s113
      %p117 = pneg %p111
      %p118 = scmp.eq.s32.totalorder %s13, 1
      %p119 = por %p117, %p118
      %p120 = scmp.ne.s32.totalorder %s112, %s115
      %p121 = scmp.eq.s32.totalorder %s13, 0
      %p122 = por %p120, %p121
      %p123 = scmp.ne.s32.totalorder %s112, %s115
      %p124 = scmp.eq.s32.totalorder %s18, 1
      %p125 = por %p123, %p124
      %p126 = scmp.ne.s32.totalorder %s115, %s116
      %p127 = scmp.eq.s32.totalorder %s18, 0
      %p128 = por %p126, %p127
      %p129 = scmp.ne.s32.totalorder %s115, %s116
      %p130 = scmp.eq.s32.totalorder %s19, 1
      %p131 = por %p129, %p130
      %p133 = scmp.ne.s32.totalorder %s116, %s132
      %p134 = scmp.eq.s32.totalorder %s19, 0
      %p135 = por %p133, %p134
      %p136 = scmp.le.s32.totalorder 1, %s13
      %p137 = scmp.lt.s32.totalorder %s13, 3
      %p138 = pnand %p136, %p137
      %p139 = pneg %p138
      // Predicated region
      $region9: #{adversarial_network_forward.3} parent=5 // pred_check
        _
      $region10: #{adversarial_network_forward.3} parent=5 // pred_check_branch
        %141 = sbr.rel (%p138) target = $region12
      $region11: #{adversarial_network_forward.3} parent=5 // pred_region
        %s142 = ssub.s32 %s13, 1
        // Predicated region
        $region13: #{adversarial_network_forward.3} parent=11 // pred_check
          %p143 = pneg %p60
        $region14: #{adversarial_network_forward.3} parent=11 // pred_check_branch
          %145 = sbr.rel (%p143) target = $region16
        $region15: #{adversarial_network_forward.3} parent=11 // pred_region
          _
        $region16: #{adversarial_network_forward.3} parent=11 // pred_fallthru
          _
        // Predicated region
        $region17: #{adversarial_network_forward.3} parent=11 // pred_check
          %p146 = pneg %p81
        $region18: #{adversarial_network_forward.3} parent=11 // pred_check_branch
          %148 = sbr.rel (%p146) target = $region20
        $region19: #{adversarial_network_forward.3} parent=11 // pred_region
          _
        $region20: #{adversarial_network_forward.3} parent=11 // pred_fallthru
          _
        // Predicated region
        $region21: #{adversarial_network_forward.3} parent=11 // pred_check
          %p149 = pneg %p102
        $region22: #{adversarial_network_forward.3} parent=11 // pred_check_branch
          %151 = sbr.rel (%p149) target = $region24
        $region23: #{adversarial_network_forward.3} parent=11 // pred_region
          _
        $region24: #{adversarial_network_forward.3} parent=11 // pred_fallthru
          _
      $region12: #{adversarial_network_forward.3} parent=5 // pred_fallthru
        _
      %p152 = scmp.lt.s32.totalorder %s13, 2
      // Predicated region
      $region25: #{adversarial_network_forward.3} parent=5 // pred_check
        %p153 = pneg %p152
      $region26: #{adversarial_network_forward.3} parent=5 // pred_check_branch
        %155 = sbr.rel (%p153) target = $region28
      $region27: #{adversarial_network_forward.3} parent=5 // pred_region
        // Predicated region
        $region29: #{adversarial_network_forward.3} parent=27 // pred_check
          %p156 = pneg %p33
        $region30: #{adversarial_network_forward.3} parent=27 // pred_check_branch
          %158 = sbr.rel (%p156) target = $region32
        $region31: #{adversarial_network_forward.3} parent=27 // pred_region
          %p159 = scmp.lt.s32.totalorder %s13, 1
          %s160 = scalar_select %p159, %s13, 1
          %s161 = smul.addr %s160, 12
          %s162 = smul.addr %s161, 8
          %s163 = scalar_lea.vmem %s0, %s162
        $region32: #{adversarial_network_forward.3} parent=27 // pred_fallthru
          _
      $region28: #{adversarial_network_forward.3} parent=5 // pred_fallthru
        _
      %p164 = scmp.le.s32.totalorder 1, %s13
      %p165 = scmp.lt.s32.totalorder %s13, 3
      %p166 = pnand %p164, %p165
      %p167 = pneg %p166
      // Predicated region
      $region33: #{adversarial_network_forward.3} parent=5 // pred_check
        _
      $region34: #{adversarial_network_forward.3} parent=5 // pred_check_branch
        %169 = sbr.rel (%p166) target = $region36
      $region35: #{adversarial_network_forward.3} parent=5 // pred_region
        %s170 = ssub.s32 %s13, 1
        %p171 = scmp.lt.s32.totalorder %s18, 1
        %s172 = scalar_select %p171, %s18, 1
        %s173 = smul.addr %s172, 12
        %s174 = smul.addr %s173, 8
        %s175 = scalar_lea.vmem %s0, %s174
        %p176 = pneg %p39
        %p177 = pneg %p36
        %p178 = pneg %p60
        %p179 = pneg %p57
        %p180 = pneg %p81
        %p181 = pneg %p78
        %p182 = pneg %p102
        %p183 = pneg %p99
        %p184 = pneg %p128
        %p185 = pneg %p125
        %s186 = sand.u32 %s115, 1
        %s187 = scalar_lea.sflag [#allocation3], %s186
        %s188 = sand.u32 %s115, 1
        %s189 = smul.addr %s188, 16
        %s190 = scalar_lea.vmem [#allocation2], %s189
        %p191 = scmp.lt.s32.totalorder %s18, 1
        %s192 = scalar_select %p191, %s18, 1
        %s193 = smul.addr %s192, 12
        %s194 = smul.addr %s193, 8
        %s195 = scalar_lea.vmem %s0, %s194
        %v196 = vld [vmem:[%s195] sm:$0xff]
        %v197 = vld [vmem:[%s195 + $0x8] sm:$0xff]
        %v198 = vld [vmem:[%s195 + $0x10] sm:$0xff]
        %v199 = vld [vmem:[%s195 + $0x18] sm:$0xff]
        %v200 = vld [vmem:[%s195 + $0x20] sm:$0xff]
        %v201 = vld [vmem:[%s195 + $0x28] sm:$0xff]
        %v202 = vld [vmem:[%s195 + $0x30] sm:$0xff]
        %v203 = vld [vmem:[%s195 + $0x38] sm:$0xff]
        %v204 = vld [vmem:[%s195 + $0x40] sm:$0xf]
        %v205 = vld [vmem:[%s195 + $0x48] sm:$0xf]
        %v206 = vld [vmem:[%s195 + $0x50] sm:$0xf]
        %v207 = vld [vmem:[%s195 + $0x58] sm:$0xf]
        %v208 = vld [vmem:[%s1] sm:$0xff]
        %v209 = vld [vmem:[%s1 + $0x8] sm:$0xff]
        %v210 = vld [vmem:[%s1 + $0x10] sm:$0xff]
        %v211 = vld [vmem:[%s1 + $0x18] sm:$0xff]
        %v212 = vld [vmem:[%s1 + $0x20] sm:$0xff]
        %v213 = vld [vmem:[%s1 + $0x28] sm:$0xff]
        %v214 = vld [vmem:[%s1 + $0x30] sm:$0xff]
        %v215 = vld [vmem:[%s1 + $0x38] sm:$0xff]
        %v216 = vld [vmem:[%s1 + $0x40] sm:$0xff]
        %v217 = vld [vmem:[%s1 + $0x48] sm:$0xff]
        %v218 = vld [vmem:[%s1 + $0x50] sm:$0xff]
        %v219 = vld [vmem:[%s1 + $0x58] sm:$0xff]
        %v220 = vld [vmem:[%s1 + $0x60] sm:$0xff]
        %v221 = vld [vmem:[%s1 + $0x68] sm:$0xff]
        %v222 = vld [vmem:[%s1 + $0x70] sm:$0xff]
        %v223 = vld [vmem:[%s1 + $0x78] sm:$0xff]
        %v224 = vld [vmem:[%s1 + $0x80] sm:$0xff]
        %v225 = vld [vmem:[%s1 + $0x88] sm:$0xff]
        %v226 = vld [vmem:[%s1 + $0x90] sm:$0xff]
        %v227 = vld [vmem:[%s1 + $0x98] sm:$0xff]
        %v228 = vld [vmem:[%s1 + $0xa0] sm:$0xff]
        %v229 = vld [vmem:[%s1 + $0xa8] sm:$0xff]
        %v230 = vld [vmem:[%s1 + $0xb0] sm:$0xff]
        %v231 = vld [vmem:[%s1 + $0xb8] sm:$0xff]
        %v232 = vld [vmem:[%s1 + $0xc0] sm:$0xff]
        %v233 = vld [vmem:[%s1 + $0xc8] sm:$0xff]
        %v234 = vld [vmem:[%s1 + $0xd0] sm:$0xff]
        %v235 = vld [vmem:[%s1 + $0xd8] sm:$0xff]
        %v236 = vld [vmem:[%s1 + $0xe0] sm:$0xff]
        %v237 = vld [vmem:[%s1 + $0xe8] sm:$0xff]
        %v238 = vld [vmem:[%s1 + $0xf0] sm:$0xff]
        %v239 = vld [vmem:[%s1 + $0xf8] sm:$0xff]
        %v240 = vld [vmem:[%s1 + $0x100] sm:$0xff]
        %v241 = vld [vmem:[%s1 + $0x108] sm:$0xff]
        %v242 = vld [vmem:[%s1 + $0x110] sm:$0xff]
        %v243 = vld [vmem:[%s1 + $0x118] sm:$0xff]
        %v244 = vld [vmem:[%s1 + $0x120] sm:$0xff]
        %v245 = vld [vmem:[%s1 + $0x128] sm:$0xff]
        %v246 = vld [vmem:[%s1 + $0x130] sm:$0xff]
        %v247 = vld [vmem:[%s1 + $0x138] sm:$0xff]
        %v248 = vld [vmem:[%s1 + $0x140] sm:$0xff]
        %v249 = vld [vmem:[%s1 + $0x148] sm:$0xff]
        %v250 = vld [vmem:[%s1 + $0x150] sm:$0xff]
        %v251 = vld [vmem:[%s1 + $0x158] sm:$0xff]
        %v252 = vld [vmem:[%s1 + $0x160] sm:$0xff]
        %v253 = vld [vmem:[%s1 + $0x168] sm:$0xff]
        %v254 = vld [vmem:[%s1 + $0x170] sm:$0xff]
        %v255 = vld [vmem:[%s1 + $0x178] sm:$0xff]
        %v256 = vld [vmem:[%s1 + $0x180] sm:$0xff]
        %v257 = vld [vmem:[%s1 + $0x188] sm:$0xff]
        %v258 = vld [vmem:[%s1 + $0x190] sm:$0xff]
        %v259 = vld [vmem:[%s1 + $0x198] sm:$0xff]
        %v260 = vld [vmem:[%s1 + $0x1a0] sm:$0xff]
        %v261 = vld [vmem:[%s1 + $0x1a8] sm:$0xff]
        %v262 = vld [vmem:[%s1 + $0x1b0] sm:$0xff]
        %v263 = vld [vmem:[%s1 + $0x1b8] sm:$0xff]
        %v264 = vld [vmem:[%s1 + $0x1c0] sm:$0xff]
        %v265 = vld [vmem:[%s1 + $0x1c8] sm:$0xff]
        %v266 = vld [vmem:[%s1 + $0x1d0] sm:$0xff]
        %v267 = vld [vmem:[%s1 + $0x1d8] sm:$0xff]
        %v268 = vld [vmem:[%s1 + $0x1e0] sm:$0xff]
        %v269 = vld [vmem:[%s1 + $0x1e8] sm:$0xff]
        %v270 = vld [vmem:[%s1 + $0x1f0] sm:$0xff]
        %v271 = vld [vmem:[%s1 + $0x1f8] sm:$0xff]
        %s272 = scalar_lea.vmem %s1, 512
        %v273 = vld [vmem:[%s272] sm:$0xff]
        %v274 = vld [vmem:[%s272 + $0x8] sm:$0xff]
        %v275 = vld [vmem:[%s272 + $0x10] sm:$0xff]
        %v276 = vld [vmem:[%s272 + $0x18] sm:$0xff]
        %v277 = vld [vmem:[%s272 + $0x20] sm:$0xff]
        %v278 = vld [vmem:[%s272 + $0x28] sm:$0xff]
        %v279 = vld [vmem:[%s272 + $0x30] sm:$0xff]
        %v280 = vld [vmem:[%s272 + $0x38] sm:$0xff]
        %v281 = vld [vmem:[%s272 + $0x40] sm:$0xff]
        %v282 = vld [vmem:[%s272 + $0x48] sm:$0xff]
        %v283 = vld [vmem:[%s272 + $0x50] sm:$0xff]
        %v284 = vld [vmem:[%s272 + $0x58] sm:$0xff]
        %v285 = vld [vmem:[%s272 + $0x60] sm:$0xff]
        %v286 = vld [vmem:[%s272 + $0x68] sm:$0xff]
        %v287 = vld [vmem:[%s272 + $0x70] sm:$0xff]
        %v288 = vld [vmem:[%s272 + $0x78] sm:$0xff]
        %v289 = vld [vmem:[%s272 + $0x80] sm:$0xff]
        %v290 = vld [vmem:[%s272 + $0x88] sm:$0xff]
        %v291 = vld [vmem:[%s272 + $0x90] sm:$0xff]
        %v292 = vld [vmem:[%s272 + $0x98] sm:$0xff]
        %v293 = vld [vmem:[%s272 + $0xa0] sm:$0xff]
        %v294 = vld [vmem:[%s272 + $0xa8] sm:$0xff]
        %v295 = vld [vmem:[%s272 + $0xb0] sm:$0xff]
        %v296 = vld [vmem:[%s272 + $0xb8] sm:$0xff]
        %v297 = vld [vmem:[%s272 + $0xc0] sm:$0xff]
        %v298 = vld [vmem:[%s272 + $0xc8] sm:$0xff]
        %v299 = vld [vmem:[%s272 + $0xd0] sm:$0xff]
        %v300 = vld [vmem:[%s272 + $0xd8] sm:$0xff]
        %v301 = vld [vmem:[%s272 + $0xe0] sm:$0xff]
        %v302 = vld [vmem:[%s272 + $0xe8] sm:$0xff]
        %v303 = vld [vmem:[%s272 + $0xf0] sm:$0xff]
        %v304 = vld [vmem:[%s272 + $0xf8] sm:$0xff]
        %v305 = vld [vmem:[%s272 + $0x100] sm:$0xff]
        %v306 = vld [vmem:[%s272 + $0x108] sm:$0xff]
        %v307 = vld [vmem:[%s272 + $0x110] sm:$0xff]
        %v308 = vld [vmem:[%s272 + $0x118] sm:$0xff]
        %v309 = vld [vmem:[%s272 + $0x120] sm:$0xff]
        %v310 = vld [vmem:[%s272 + $0x128] sm:$0xff]
        %v311 = vld [vmem:[%s272 + $0x130] sm:$0xff]
        %v312 = vld [vmem:[%s272 + $0x138] sm:$0xff]
        %v313 = vld [vmem:[%s272 + $0x140] sm:$0xff]
        %v314 = vld [vmem:[%s272 + $0x148] sm:$0xff]
        %v315 = vld [vmem:[%s272 + $0x150] sm:$0xff]
        %v316 = vld [vmem:[%s272 + $0x158] sm:$0xff]
        %v317 = vld [vmem:[%s272 + $0x160] sm:$0xff]
        %v318 = vld [vmem:[%s272 + $0x168] sm:$0xff]
        %v319 = vld [vmem:[%s272 + $0x170] sm:$0xff]
        %v320 = vld [vmem:[%s272 + $0x178] sm:$0xff]
        %v321 = vld [vmem:[%s272 + $0x180] sm:$0xff]
        %v322 = vld [vmem:[%s272 + $0x188] sm:$0xff]
        %v323 = vld [vmem:[%s272 + $0x190] sm:$0xff]
        %v324 = vld [vmem:[%s272 + $0x198] sm:$0xff]
        %v325 = vld [vmem:[%s272 + $0x1a0] sm:$0xff]
        %v326 = vld [vmem:[%s272 + $0x1a8] sm:$0xff]
        %v327 = vld [vmem:[%s272 + $0x1b0] sm:$0xff]
        %v328 = vld [vmem:[%s272 + $0x1b8] sm:$0xff]
        %v329 = vld [vmem:[%s272 + $0x1c0] sm:$0xff]
        %v330 = vld [vmem:[%s272 + $0x1c8] sm:$0xff]
        %v331 = vld [vmem:[%s272 + $0x1d0] sm:$0xff]
        %v332 = vld [vmem:[%s272 + $0x1d8] sm:$0xff]
        %v333 = vld [vmem:[%s272 + $0x1e0] sm:$0xff]
        %v334 = vld [vmem:[%s272 + $0x1e8] sm:$0xff]
        %v335 = vld [vmem:[%s272 + $0x1f0] sm:$0xff]
        %v336 = vld [vmem:[%s272 + $0x1f8] sm:$0xff]
        %vm349 = vcmask 1043456
        %v350 = vrot.slane %v196, 4
        %v351 = vrot.slane %v200, 4
        %v352 = vsel %vm349, %v350, %v351
        %v353 = vrot.slane %v197, 4
        %v354 = vrot.slane %v201, 4
        %v355 = vsel %vm349, %v353, %v354
        %v356 = vrot.slane %v198, 4
        %v357 = vrot.slane %v202, 4
        %v358 = vsel %vm349, %v356, %v357
        %v359 = vrot.slane %v199, 4
        %v360 = vrot.slane %v203, 4
        %v361 = vsel %vm349, %v359, %v360
        %v362 = vrot.slane %v204, 4
        %v363 = vsel %vm349, %v351, %v362
        %v364 = vrot.slane %v205, 4
        %v365 = vsel %vm349, %v354, %v364
        %v366 = vrot.slane %v206, 4
        %v367 = vsel %vm349, %v357, %v366
        %v368 = vrot.slane %v207, 4
        %v369 = vsel %vm349, %v360, %v368
        %378 = vmatprep.subr.mxu0 0.0
        %379 = vmatpush1.msra.mxu0 %v288
        %380 = vmatprep.subr.mxu0 0.0
        %381 = vmatpush1.msra.mxu0 %v287
        %382 = vmatprep.subr.mxu0 0.0
        %383 = vmatpush1.msra.mxu0 %v286
        %384 = vmatprep.subr.mxu0 0.0
        %385 = vmatpush1.msra.mxu0 %v285
        %386 = vmatprep.subr.mxu0 0.0
        %387 = vmatpush1.msra.mxu0 %v284
        %388 = vmatprep.subr.mxu0 0.0
        %389 = vmatpush1.msra.mxu0 %v283
        %390 = vmatprep.subr.mxu0 0.0
        %391 = vmatpush1.msra.mxu0 %v282
        %392 = vmatprep.subr.mxu0 0.0
        %393 = vmatpush1.msra.mxu0 %v281
        %394 = vmatprep.subr.mxu0 0.0
        %395 = vmatpush1.msra.mxu0 %v280
        %396 = vmatprep.subr.mxu0 0.0
        %397 = vmatpush1.msra.mxu0 %v279
        %398 = vmatprep.subr.mxu0 0.0
        %399 = vmatpush1.msra.mxu0 %v278
        %400 = vmatprep.subr.mxu0 0.0
        %401 = vmatpush1.msra.mxu0 %v277
        %402 = vmatprep.subr.mxu0 0.0
        %403 = vmatpush1.msra.mxu0 %v276
        %404 = vmatprep.subr.mxu0 0.0
        %405 = vmatpush1.msra.mxu0 %v275
        %406 = vmatprep.subr.mxu0 0.0
        %407 = vmatpush1.msra.mxu0 %v274
        %408 = vmatprep.subr.mxu0 0.0
        %409 = vmatpush1.msra.mxu0 %v273
        %410 = vmatprep.subr.mxu0 0.0
        %411 = vmatpush2.msra.mxu0 %v304
        %412 = vmatprep.subr.mxu0 0.0
        %413 = vmatpush2.msra.mxu0 %v303
        %414 = vmatprep.subr.mxu0 0.0
        %415 = vmatpush2.msra.mxu0 %v302
        %416 = vmatprep.subr.mxu0 0.0
        %417 = vmatpush2.msra.mxu0 %v301
        %418 = vmatprep.subr.mxu0 0.0
        %419 = vmatpush2.msra.mxu0 %v300
        %420 = vmatprep.subr.mxu0 0.0
        %421 = vmatpush2.msra.mxu0 %v299
        %422 = vmatprep.subr.mxu0 0.0
        %423 = vmatpush2.msra.mxu0 %v298
        %424 = vmatprep.subr.mxu0 0.0
        %425 = vmatpush2.msra.mxu0 %v297
        %426 = vmatprep.subr.mxu0 0.0
        %427 = vmatpush2.msra.mxu0 %v296
        %428 = vmatprep.subr.mxu0 0.0
        %429 = vmatpush2.msra.mxu0 %v295
        %430 = vmatprep.subr.mxu0 0.0
        %431 = vmatpush2.msra.mxu0 %v294
        %432 = vmatprep.subr.mxu0 0.0
        %433 = vmatpush2.msra.mxu0 %v293
        %434 = vmatprep.subr.mxu0 0.0
        %435 = vmatpush2.msra.mxu0 %v292
        %436 = vmatprep.subr.mxu0 0.0
        %437 = vmatpush2.msra.mxu0 %v291
        %438 = vmatprep.subr.mxu0 0.0
        %439 = vmatpush2.msra.mxu0 %v290
        %440 = vmatprep.subr.mxu0 0.0
        %441 = vmatpush2.msra.mxu0 %v289
        %442 = vmatprep.mubr.f32.mxu0 %v355
        %443 = vmatmul.mubr.f32.gmra.mxu0 %v352
        %v444 = vpop.f32.mrf.mxu0
        %v445 = vadd.f32 0.0, %v444
        %v446 = vpop.f32.mrf.mxu0
        %447 = vmatprep.mubr.f32.mxu0 %v365
        %448 = vmatmul.mubr.f32.gmra.mxu0 %v363
        %v449 = vpop.f32.mrf.mxu0
        %v450 = vadd.f32 0.0, %v449
        %v451 = vpop.f32.mrf.mxu0
        %452 = vdwg.mxu0
        %453 = vmatprep.subr.mxu0 0.0
        %454 = vmatpush1.msra.mxu0 %v320
        %455 = vmatprep.subr.mxu0 0.0
        %456 = vmatpush1.msra.mxu0 %v319
        %457 = vmatprep.subr.mxu0 0.0
        %458 = vmatpush1.msra.mxu0 %v318
        %459 = vmatprep.subr.mxu0 0.0
        %460 = vmatpush1.msra.mxu0 %v317
        %461 = vmatprep.subr.mxu0 0.0
        %462 = vmatpush1.msra.mxu0 %v316
        %463 = vmatprep.subr.mxu0 0.0
        %464 = vmatpush1.msra.mxu0 %v315
        %465 = vmatprep.subr.mxu0 0.0
        %466 = vmatpush1.msra.mxu0 %v314
        %467 = vmatprep.subr.mxu0 0.0
        %468 = vmatpush1.msra.mxu0 %v313
        %469 = vmatprep.subr.mxu0 0.0
        %470 = vmatpush1.msra.mxu0 %v312
        %471 = vmatprep.subr.mxu0 0.0
        %472 = vmatpush1.msra.mxu0 %v311
        %473 = vmatprep.subr.mxu0 0.0
        %474 = vmatpush1.msra.mxu0 %v310
        %475 = vmatprep.subr.mxu0 0.0
        %476 = vmatpush1.msra.mxu0 %v309
        %477 = vmatprep.subr.mxu0 0.0
        %478 = vmatpush1.msra.mxu0 %v308
        %479 = vmatprep.subr.mxu0 0.0
        %480 = vmatpush1.msra.mxu0 %v307
        %481 = vmatprep.subr.mxu0 0.0
        %482 = vmatpush1.msra.mxu0 %v306
        %483 = vmatprep.subr.mxu0 0.0
        %484 = vmatpush1.msra.mxu0 %v305
        %485 = vmatprep.subr.mxu0 0.0
        %486 = vmatpush2.msra.mxu0 %v336
        %487 = vmatprep.subr.mxu0 0.0
        %488 = vmatpush2.msra.mxu0 %v335
        %489 = vmatprep.subr.mxu0 0.0
        %490 = vmatpush2.msra.mxu0 %v334
        %491 = vmatprep.subr.mxu0 0.0
        %492 = vmatpush2.msra.mxu0 %v333
        %493 = vmatprep.subr.mxu0 0.0
        %494 = vmatpush2.msra.mxu0 %v332
        %495 = vmatprep.subr.mxu0 0.0
        %496 = vmatpush2.msra.mxu0 %v331
        %497 = vmatprep.subr.mxu0 0.0
        %498 = vmatpush2.msra.mxu0 %v330
        %499 = vmatprep.subr.mxu0 0.0
        %500 = vmatpush2.msra.mxu0 %v329
        %501 = vmatprep.subr.mxu0 0.0
        %502 = vmatpush2.msra.mxu0 %v328
        %503 = vmatprep.subr.mxu0 0.0
        %504 = vmatpush2.msra.mxu0 %v327
        %505 = vmatprep.subr.mxu0 0.0
        %506 = vmatpush2.msra.mxu0 %v326
        %507 = vmatprep.subr.mxu0 0.0
        %508 = vmatpush2.msra.mxu0 %v325
        %509 = vmatprep.subr.mxu0 0.0
        %510 = vmatpush2.msra.mxu0 %v324
        %511 = vmatprep.subr.mxu0 0.0
        %512 = vmatpush2.msra.mxu0 %v323
        %513 = vmatprep.subr.mxu0 0.0
        %514 = vmatpush2.msra.mxu0 %v322
        %515 = vmatprep.subr.mxu0 0.0
        %516 = vmatpush2.msra.mxu0 %v321
        %517 = vmatprep.mubr.f32.mxu0 %v361
        %518 = vmatmul.mubr.f32.gmra.mxu0 %v358
        %v519 = vpop.f32.mrf.mxu0
        %v520 = vadd.f32 %v445, %v519
        %v521 = vpop.f32.mrf.mxu0
        %522 = vmatprep.mubr.f32.mxu0 %v369
        %523 = vmatmul.mubr.f32.gmra.mxu0 %v367
        %v524 = vpop.f32.mrf.mxu0
        %v525 = vadd.f32 %v450, %v524
        %v526 = vpop.f32.mrf.mxu0
        %527 = vdwg.mxu0
        %528 = vmatprep.subr.mxu0 0.0
        %529 = vmatpush1.msra.mxu0 %v223
        %530 = vmatprep.subr.mxu0 0.0
        %531 = vmatpush1.msra.mxu0 %v222
        %532 = vmatprep.subr.mxu0 0.0
        %533 = vmatpush1.msra.mxu0 %v221
        %534 = vmatprep.subr.mxu0 0.0
        %535 = vmatpush1.msra.mxu0 %v220
        %536 = vmatprep.subr.mxu0 0.0
        %537 = vmatpush1.msra.mxu0 %v219
        %538 = vmatprep.subr.mxu0 0.0
        %539 = vmatpush1.msra.mxu0 %v218
        %540 = vmatprep.subr.mxu0 0.0
        %541 = vmatpush1.msra.mxu0 %v217
        %542 = vmatprep.subr.mxu0 0.0
        %543 = vmatpush1.msra.mxu0 %v216
        %544 = vmatprep.subr.mxu0 0.0
        %545 = vmatpush1.msra.mxu0 %v215
        %546 = vmatprep.subr.mxu0 0.0
        %547 = vmatpush1.msra.mxu0 %v214
        %548 = vmatprep.subr.mxu0 0.0
        %549 = vmatpush1.msra.mxu0 %v213
        %550 = vmatprep.subr.mxu0 0.0
        %551 = vmatpush1.msra.mxu0 %v212
        %552 = vmatprep.subr.mxu0 0.0
        %553 = vmatpush1.msra.mxu0 %v211
        %554 = vmatprep.subr.mxu0 0.0
        %555 = vmatpush1.msra.mxu0 %v210
        %556 = vmatprep.subr.mxu0 0.0
        %557 = vmatpush1.msra.mxu0 %v209
        %558 = vmatprep.subr.mxu0 0.0
        %559 = vmatpush1.msra.mxu0 %v208
        %560 = vmatprep.subr.mxu0 0.0
        %561 = vmatpush2.msra.mxu0 %v239
        %562 = vmatprep.subr.mxu0 0.0
        %563 = vmatpush2.msra.mxu0 %v238
        %564 = vmatprep.subr.mxu0 0.0
        %565 = vmatpush2.msra.mxu0 %v237
        %566 = vmatprep.subr.mxu0 0.0
        %567 = vmatpush2.msra.mxu0 %v236
        %568 = vmatprep.subr.mxu0 0.0
        %569 = vmatpush2.msra.mxu0 %v235
        %570 = vmatprep.subr.mxu0 0.0
        %571 = vmatpush2.msra.mxu0 %v234
        %572 = vmatprep.subr.mxu0 0.0
        %573 = vmatpush2.msra.mxu0 %v233
        %574 = vmatprep.subr.mxu0 0.0
        %575 = vmatpush2.msra.mxu0 %v232
        %576 = vmatprep.subr.mxu0 0.0
        %577 = vmatpush2.msra.mxu0 %v231
        %578 = vmatprep.subr.mxu0 0.0
        %579 = vmatpush2.msra.mxu0 %v230
        %580 = vmatprep.subr.mxu0 0.0
        %581 = vmatpush2.msra.mxu0 %v229
        %582 = vmatprep.subr.mxu0 0.0
        %583 = vmatpush2.msra.mxu0 %v228
        %584 = vmatprep.subr.mxu0 0.0
        %585 = vmatpush2.msra.mxu0 %v227
        %586 = vmatprep.subr.mxu0 0.0
        %587 = vmatpush2.msra.mxu0 %v226
        %588 = vmatprep.subr.mxu0 0.0
        %589 = vmatpush2.msra.mxu0 %v225
        %590 = vmatprep.subr.mxu0 0.0
        %591 = vmatpush2.msra.mxu0 %v224
        %592 = vmatprep.mubr.f32.mxu0 %v197
        %593 = vmatmul.mubr.f32.gmra.mxu0 %v196
        %v594 = vpop.f32.mrf.mxu0
        %v595 = vadd.f32 %v520, %v594
        %v596 = vpop.f32.mrf.mxu0
        %597 = vmatprep.mubr.f32.mxu0 %v201
        %598 = vmatmul.mubr.f32.gmra.mxu0 %v200
        %v599 = vpop.f32.mrf.mxu0
        %v600 = vadd.f32 %v525, %v599
        %v601 = vpop.f32.mrf.mxu0
        %602 = vdwg.mxu0
        %603 = vmatprep.subr.mxu0 0.0
        %604 = vmatpush1.msra.mxu0 %v255
        %605 = vmatprep.subr.mxu0 0.0
        %606 = vmatpush1.msra.mxu0 %v254
        %607 = vmatprep.subr.mxu0 0.0
        %608 = vmatpush1.msra.mxu0 %v253
        %609 = vmatprep.subr.mxu0 0.0
        %610 = vmatpush1.msra.mxu0 %v252
        %611 = vmatprep.subr.mxu0 0.0
        %612 = vmatpush1.msra.mxu0 %v251
        %613 = vmatprep.subr.mxu0 0.0
        %614 = vmatpush1.msra.mxu0 %v250
        %615 = vmatprep.subr.mxu0 0.0
        %616 = vmatpush1.msra.mxu0 %v249
        %617 = vmatprep.subr.mxu0 0.0
        %618 = vmatpush1.msra.mxu0 %v248
        %619 = vmatprep.subr.mxu0 0.0
        %620 = vmatpush1.msra.mxu0 %v247
        %621 = vmatprep.subr.mxu0 0.0
        %622 = vmatpush1.msra.mxu0 %v246
        %623 = vmatprep.subr.mxu0 0.0
        %624 = vmatpush1.msra.mxu0 %v245
        %625 = vmatprep.subr.mxu0 0.0
        %626 = vmatpush1.msra.mxu0 %v244
        %627 = vmatprep.subr.mxu0 0.0
        %628 = vmatpush1.msra.mxu0 %v243
        %629 = vmatprep.subr.mxu0 0.0
        %630 = vmatpush1.msra.mxu0 %v242
        %631 = vmatprep.subr.mxu0 0.0
        %632 = vmatpush1.msra.mxu0 %v241
        %633 = vmatprep.subr.mxu0 0.0
        %634 = vmatpush1.msra.mxu0 %v240
        %635 = vmatprep.subr.mxu0 0.0
        %636 = vmatpush2.msra.mxu0 %v271
        %637 = vmatprep.subr.mxu0 0.0
        %638 = vmatpush2.msra.mxu0 %v270
        %639 = vmatprep.subr.mxu0 0.0
        %640 = vmatpush2.msra.mxu0 %v269
        %641 = vmatprep.subr.mxu0 0.0
        %642 = vmatpush2.msra.mxu0 %v268
        %643 = vmatprep.subr.mxu0 0.0
        %644 = vmatpush2.msra.mxu0 %v267
        %645 = vmatprep.subr.mxu0 0.0
        %646 = vmatpush2.msra.mxu0 %v266
        %647 = vmatprep.subr.mxu0 0.0
        %648 = vmatpush2.msra.mxu0 %v265
        %649 = vmatprep.subr.mxu0 0.0
        %650 = vmatpush2.msra.mxu0 %v264
        %651 = vmatprep.subr.mxu0 0.0
        %652 = vmatpush2.msra.mxu0 %v263
        %653 = vmatprep.subr.mxu0 0.0
        %654 = vmatpush2.msra.mxu0 %v262
        %655 = vmatprep.subr.mxu0 0.0
        %656 = vmatpush2.msra.mxu0 %v261
        %657 = vmatprep.subr.mxu0 0.0
        %658 = vmatpush2.msra.mxu0 %v260
        %659 = vmatprep.subr.mxu0 0.0
        %660 = vmatpush2.msra.mxu0 %v259
        %661 = vmatprep.subr.mxu0 0.0
        %662 = vmatpush2.msra.mxu0 %v258
        %663 = vmatprep.subr.mxu0 0.0
        %664 = vmatpush2.msra.mxu0 %v257
        %665 = vmatprep.subr.mxu0 0.0
        %666 = vmatpush2.msra.mxu0 %v256
        %667 = vmatprep.mubr.f32.mxu0 %v199
        %668 = vmatmul.mubr.f32.gmra.mxu0 %v198
        %v669 = vpop.f32.mrf.mxu0
        %v670 = vadd.f32 %v595, %v669
        %v671 = vpop.f32.mrf.mxu0
        %672 = vmatprep.mubr.f32.mxu0 %v203
        %673 = vmatmul.mubr.f32.gmra.mxu0 %v202
        %v674 = vpop.f32.mrf.mxu0
        %v675 = vadd.f32 %v600, %v674
        %v676 = vpop.f32.mrf.mxu0
        %677 = vdwg.mxu0
        %v678 = vadd.f32 %v670, %v675
        %v679 = vrot.slane %v678, 4
        %v680 = vadd.f32 %v678, %v679
        %v681 = vrot.slane %v680, 2
        %v682 = vadd.f32 %v680, %v681
        %v683 = vrot.slane %v682, 1
        %v684 = vadd.f32 %v682, %v683
        %v685 = vrcp.pop 16.0
        %v686 = vmul.f32 %v684, %v685
        %v687 = vsub.f32 %v670, %v686
        %v688 = vsub.f32 %v675, %v686
        %v689 = vmul.f32 %v687, %v687
        %v690 = vmul.f32 %v688, %v688
        %v691 = vadd.f32 %v689, %v690
        %v692 = vrot.slane %v691, 4
        %v693 = vadd.f32 %v691, %v692
        %v694 = vrot.slane %v693, 2
        %v695 = vadd.f32 %v693, %v694
        %v696 = vrot.slane %v695, 1
        %v697 = vadd.f32 %v695, %v696
        %v698 = vmul.f32 %v697, %v685
        %v699 = vadd.f32 %v698, 0.001
        %v700 = vrsqrt.pop %v699
        %v701 = vmul.f32 %v687, %v700
        %v702 = vmul.f32 %v688, %v700
        %v703 = vld [vmem:[%s2] sm:$0x1]
        %v705 = vlaneseq
        %v706 = vshrl.u32 %v705, 7
        %v707 = vsub.s32 0, %v706
        %v708 = vrot.slane %v703, %v707
        %v710 = vmul.f32 %v701, %v708
        %v711 = vmul.f32 %v702, %v708
        %v712 = vld [vmem:[%s3] sm:$0x1]
        %v714 = vlaneseq
        %v715 = vshrl.u32 %v714, 7
        %v716 = vsub.s32 0, %v715
        %v717 = vrot.slane %v712, %v716
        %v719 = vadd.f32 %v710, %v717
        %v720 = vadd.f32 %v711, %v717
        %vm721 = vcmp.ge.f32.partialorder %v719, 0.0
        %vm722 = vcmp.ge.f32.partialorder %v720, 0.0
        %v723 = vmul.f32 %v719, 0.2
        %v724 = vmul.f32 %v720, 0.2
        %v725 = vsel %vm721, %v719, %v723
        %v726 = vsel %vm722, %v720, %v724
        %727 = vst [vmem:[%s190] sm:$0xff] %v725
        %728 = vst [vmem:[%s190 + $0x8] sm:$0xff] %v726
        %s729 = sand.u32 %s115, 1
        %s730 = scalar_lea.sflag [#allocation3], %s729
        %s731 = sand.u32 %s115, 1
        %s732 = smul.addr %s731, 16
        %s733 = scalar_lea.vmem [#allocation2], %s732
        // Predicated region
        $region37: #{adversarial_network_forward.3} parent=35 // pred_check
          %p734 = pneg %p125
        $region38: #{adversarial_network_forward.3} parent=35 // pred_check_branch
          %736 = sbr.rel (%p734) target = $region40
        $region39: #{adversarial_network_forward.3} parent=35 // pred_region
          %s738 = ssub.s32 256, 256
          %739 = vsyncadd %s730, %s738
          %s740 = smul.addr %s18, 2
          %s741 = smul.addr %s740, 128
          %s742 = scalar_lea.hbm %s4, %s741
          %s743 = sshll.u32 %s733, 4
          %s744 = int_to_ptr.vmem [resolvable:$true] %s743
          %749 = dma.vmem_to_hbm [thread:$0]  %s744, 256, %s742, %s730, 128, 128, 8
        $region40: #{adversarial_network_forward.3} parent=35 // pred_fallthru
          _
      $region36: #{adversarial_network_forward.3} parent=5 // pred_fallthru
        _
      %p750 = scmp.le.s32.totalorder 2, %s13
      // Predicated region
      $region41: #{adversarial_network_forward.3} parent=5 // pred_check
        %p751 = pneg %p750
      $region42: #{adversarial_network_forward.3} parent=5 // pred_check_branch
        %753 = sbr.rel (%p751) target = $region44
      $region43: #{adversarial_network_forward.3} parent=5 // pred_region
        %s754 = ssub.s32 %s13, 2
        // Predicated region
        $region45: #{adversarial_network_forward.3} parent=43 // pred_check
          %p755 = pneg %p131
        $region46: #{adversarial_network_forward.3} parent=43 // pred_check_branch
          %757 = sbr.rel (%p755) target = $region48
        $region47: #{adversarial_network_forward.3} parent=43 // pred_region
          %s758 = sand.u32 %s116, 1
          %s759 = scalar_lea.sflag [#allocation3], %s758
          %s760 = sand.u32 %s116, 1
          %s761 = smul.addr %s760, 16
          %s762 = scalar_lea.vmem [#allocation2], %s761
          %763 = dma.done %s759, 256
        $region48: #{adversarial_network_forward.3} parent=43 // pred_fallthru
          _
      $region44: #{adversarial_network_forward.3} parent=5 // pred_fallthru
        _
    $region6: #{adversarial_network_forward.3} parent=1 // loop_footer
      %s17 = sadd.s32 1, %s13
    $region7: #{adversarial_network_forward.3} parent=1 // loop_footer_branch
      %12 = sbr.rel target = $region3
    $region8: #{adversarial_network_forward.3} parent=1 // loop_exit
      _
    %764 = vsyncpa [#allocation3], 1
    %s765 = scalar_lea.sflag [#allocation3], 1
    %766 = vsyncpa %s765, 1

</llo_original>
